<compile_context>
chip_gen: v7x
topology: tpu7x:2x2x1
jax: 0.10.0
libtpu: 0.0.40
codegen_flags: <defaults>
</compile_context>

<pallas_src>
import functools
import math

import jax
import jax.numpy as jnp
from jax.experimental import pallas as pl
from jax.experimental.pallas import tpu as pltpu

# TODO(synk): the reference uses a custom LayerNorm(d_model) whose eps /
# variance convention is not shown; we use the common annotated-transformer
# eps=1e-6 with biased variance.  Change to 1e-5 if it is torch.nn.LayerNorm.
LN_EPS = 1e-6


def _layer_norm(x, gamma, beta):
    mean = jnp.mean(x, axis=-1, keepdims=True)
    var = jnp.mean((x - mean) ** 2, axis=-1, keepdims=True)
    inv = jax.lax.rsqrt(var + LN_EPS)      # rsqrt -> EUP slot (free next to VPU work)
    return (x - mean) * inv * gamma + beta


def fused_encoder_kernel(
    x_ref,
    wqkv_ref, bqkv_ref, woh_ref, bo_ref,
    g1_ref, be1_ref,
    w1_ref, bf1_ref, w2_ref, bf2_ref,
    g2_ref, be2_ref,
    o_ref,
    act_ref,
    *, num_heads, apply_ffn, apply_ln_attn, apply_ln_ffd, residual,
):
    layer = pl.program_id(1)
    n_layers = pl.num_programs(1)

    # First layer: load this batch element's activations into the resident
    # VMEM scratch (astype is a no-op for f32 inputs).
    @pl.when(layer == 0)
    def _():
        act_ref[...] = x_ref[0].astype(jnp.float32)

    x = act_ref[...]                         # (S, D) f32, resident across layers
    S, D = x.shape
    dk = D // num_heads

    # ---- multi-head self-attention -------------------------------------
    # Fused QKV projection: one (S, D) x (D, 3D) matmul + one fused bias add.
    # NOTE: the 1/sqrt(dk) score scale is pre-folded into Wq/bq by the wrapper.
    qkv = jnp.dot(x, wqkv_ref[0], preferred_element_type=jnp.float32) + bqkv_ref[0]

    # Per-head attention.  W_o is pre-split per head (H, dk, D) in the wrapper,
    # so each head's context is projected and summed directly -- no lane-dim
    # concatenate of head outputs.
    # TODO(synk): at production d_model, replace the static head loop with a
    # batched dot_general over an (H, S, dk) layout to avoid narrow lane slices.
    attn = None
    for h in range(num_heads):               # static loop over heads
        q_h = qkv[:, h * dk:(h + 1) * dk]
        k_h = qkv[:, D + h * dk: D + (h + 1) * dk]
        v_h = qkv[:, 2 * D + h * dk: 2 * D + (h + 1) * dk]
        s_h = jnp.dot(q_h, k_h.T, preferred_element_type=jnp.float32)          # (S, S)
        s_h = s_h - jnp.max(s_h, axis=-1, keepdims=True)
        p_h = jnp.exp(s_h)
        p_h = p_h / jnp.sum(p_h, axis=-1, keepdims=True)
        ctx_h = jnp.dot(p_h, v_h, preferred_element_type=jnp.float32)          # (S, dk)
        contrib = jnp.dot(ctx_h, woh_ref[0, h], preferred_element_type=jnp.float32)
        attn = contrib if attn is None else attn + contrib
    attn = attn + bo_ref[0]                  # single output-bias broadcast

    if residual:
        attn = x + attn                      # dropout == identity (eval mode)
    if apply_ln_attn:
        attn = _layer_norm(attn, g1_ref[0], be1_ref[0])

    y = attn
    # ---- feed-forward ----------------------------------------------------
    if apply_ffn:
        h1 = jnp.dot(y, w1_ref[0], preferred_element_type=jnp.float32) + bf1_ref[0]
        h1 = jnp.maximum(h1, 0.0)
        ff = jnp.dot(h1, w2_ref[0], preferred_element_type=jnp.float32) + bf2_ref[0]
        if residual:
            ff = y + ff                      # dropout == identity (eval mode)
        if apply_ln_ffd:
            ff = _layer_norm(ff, g2_ref[0], be2_ref[0])
        y = ff

    act_ref[...] = y                         # carry to next layer

    # Last layer: fold the sequence mean-pool into the epilogue (no separate
    # pallas_call / no extra HBM round trip of the (B, S, D) activations).
    @pl.when(layer == n_layers - 1)
    def _():
        o_ref[0] = jnp.mean(y, axis=0, keepdims=True).astype(o_ref.dtype)


_STACKED_ORDER = ("wqkv", "bqkv", "wo_h", "bo",
                  "g1", "be1", "w1", "bf1", "w2", "bf2", "g2", "be2")

_CHOICE_FLAGS = {
    1: dict(apply_ffn=False, apply_ln_attn=False, apply_ln_ffd=False, residual=False),
    2: dict(apply_ffn=True,  apply_ln_attn=False, apply_ln_ffd=False, residual=False),
    3: dict(apply_ffn=False, apply_ln_attn=True,  apply_ln_ffd=False, residual=False),
    4: dict(apply_ffn=True,  apply_ln_attn=True,  apply_ln_ffd=True,  residual=False),
}
_DEFAULT_FLAGS = dict(apply_ffn=True, apply_ln_attn=True, apply_ln_ffd=True, residual=True)


def stack_params(layer_params, num_heads):
    """Fuse Q/K/V into one (D, 3D) weight (folding the 1/sqrt(dk) score scale
    into the Q slice), split W_o per head, and stack all per-layer tensors
    along a leading layer axis so one pallas_call can stream one layer's
    weights per grid step."""
    d = layer_params[0]["wq"].shape[0]
    dk = d // num_heads
    scale = 1.0 / math.sqrt(dk)
    out = {k: [] for k in _STACKED_ORDER}
    for lp in layer_params:
        out["wqkv"].append(jnp.concatenate([lp["wq"] * scale, lp["wk"], lp["wv"]], axis=1))
        out["bqkv"].append(jnp.concatenate([lp["bq"] * scale, lp["bk"], lp["bv"]], axis=1))
        out["wo_h"].append(lp["wo"].reshape(num_heads, dk, d))   # head-major rows
        out["bo"].append(lp["bo"])
        for k in ("g1", "be1", "w1", "bf1", "w2", "bf2", "g2", "be2"):
            out[k].append(lp[k])
    return {k: jnp.stack(v, axis=0) for k, v in out.items()}


def sentence_encoder(x, stacked, choice, num_heads):
    """x: (B, S, D) -> (B, D), matching `torch.mean(x, dim=1)` in the reference."""
    # TODO(synk): the PyTorch forward's print() debug statements are omitted.
    B, S, D = x.shape
    n_layers = stacked["wqkv"].shape[0]
    flags = _CHOICE_FLAGS.get(choice, _DEFAULT_FLAGS)

    kern = functools.partial(fused_encoder_kernel, num_heads=num_heads, **flags)
    params = [stacked[k] for k in _STACKED_ORDER]

    def layer_spec(p):
        nzeros = p.ndim - 1
        return pl.BlockSpec((1,) + tuple(p.shape[1:]),
                            lambda b, l, _n=nzeros: (l,) + (0,) * _n)

    # Input block index is constant over the layer axis -> fetched from HBM once.
    in_specs = [pl.BlockSpec((1, S, D), lambda b, l: (b, 0, 0))]
    in_specs += [layer_spec(p) for p in params]

    out = pl.pallas_call(
        kern,
        out_shape=jax.ShapeDtypeStruct((B, 1, D), x.dtype),
        grid=(B, n_layers),
        in_specs=in_specs,
        out_specs=pl.BlockSpec((1, 1, D), lambda b, l: (b, 0, 0)),
        scratch_shapes=[pltpu.VMEM((S, D), jnp.float32)],
        compiler_params=pltpu.CompilerParams(
            dimension_semantics=("parallel", "arbitrary")),
    )(x, *params)
    return out[:, 0, :]


def init_params(key, d_model, n_layers):
    """Per-layer params mirroring the PyTorch module (weights as [in, out])."""
    d_ff = d_model * 4
    params = []
    for i in range(n_layers):
        ks = jax.random.split(jax.random.fold_in(key, i), 6)
        scale = 0.02
        lp = {
            "wq": scale * jax.random.normal(ks[0], (d_model, d_model), jnp.float32),
            "bq": jnp.zeros((1, d_model), jnp.float32),
            "wk": scale * jax.random.normal(ks[1], (d_model, d_model), jnp.float32),
            "bk": jnp.zeros((1, d_model), jnp.float32),
            "wv": scale * jax.random.normal(ks[2], (d_model, d_model), jnp.float32),
            "bv": jnp.zeros((1, d_model), jnp.float32),
            "wo": scale * jax.random.normal(ks[3], (d_model, d_model), jnp.float32),
            "bo": jnp.zeros((1, d_model), jnp.float32),
            "g1": jnp.ones((1, d_model), jnp.float32),
            "be1": jnp.zeros((1, d_model), jnp.float32),
            "w1": scale * jax.random.normal(ks[4], (d_model, d_ff), jnp.float32),
            "bf1": jnp.zeros((1, d_ff), jnp.float32),
            "w2": scale * jax.random.normal(ks[5], (d_ff, d_model), jnp.float32),
            "bf2": jnp.zeros((1, d_model), jnp.float32),
            "g2": jnp.ones((1, d_model), jnp.float32),
            "be2": jnp.zeros((1, d_model), jnp.float32),
        }
        params.append(lp)
    return params


if __name__ == "__main__":
    d_model, h, N, p_drop = 32, 4, 2, 0.1   # p_drop unused: dropout is eval-mode identity
    batch, seq = 2, 8

    key = jax.random.PRNGKey(0)
    kx, kp = jax.random.split(key)
    x = jax.random.normal(kx, (batch, seq, d_model), jnp.float32)
    layer_params = init_params(kp, d_model, N)
    stacked = stack_params(layer_params, num_heads=h)

    choice = 5  # default branch: attention + linear + norm + dropout + resnet
    out = sentence_encoder(x, stacked, choice, num_heads=h)
    out = jax.block_until_ready(out)
    assert out.shape == (batch, d_model)
    assert bool(jnp.all(jnp.isfinite(out)))
    print("KERNEL_OK")
</pallas_src>

<mosaic_0001>
module attributes {stable_mosaic.version = 11 : i64} {
  func.func @fused_encoder_kernel(%arg0: i32, %arg1: i32, %arg2: memref<1x8x32xf32, #tpu.memory_space<vmem>>, %arg3: memref<1x32x96xf32, #tpu.memory_space<vmem>>, %arg4: memref<1x1x96xf32, #tpu.memory_space<vmem>>, %arg5: memref<1x4x8x32xf32, #tpu.memory_space<vmem>>, %arg6: memref<1x1x32xf32, #tpu.memory_space<vmem>>, %arg7: memref<1x1x32xf32, #tpu.memory_space<vmem>>, %arg8: memref<1x1x32xf32, #tpu.memory_space<vmem>>, %arg9: memref<1x32x128xf32, #tpu.memory_space<vmem>>, %arg10: memref<1x1x128xf32, #tpu.memory_space<vmem>>, %arg11: memref<1x128x32xf32, #tpu.memory_space<vmem>>, %arg12: memref<1x1x32xf32, #tpu.memory_space<vmem>>, %arg13: memref<1x1x32xf32, #tpu.memory_space<vmem>>, %arg14: memref<1x1x32xf32, #tpu.memory_space<vmem>>, %arg15: memref<1x1x32xf32, #tpu.memory_space<vmem>>, %arg16: memref<8x32xf32, #tpu.memory_space<vmem>>) attributes {dimension_semantics = [#tpu.dimension_semantics<parallel>, #tpu.dimension_semantics<arbitrary>], iteration_bounds = array<i64: 2, 2>, scalar_prefetch = 0 : i64, scratch_operands = 1 : i64, tpu.core_type = #tpu.core_type<tc>, window_params = [{transform_indices = @transform_0, window_bounds = array<i64: 1, 8, 32>}, {transform_indices = @transform_1, window_bounds = array<i64: 1, 32, 96>}, {transform_indices = @transform_2, window_bounds = array<i64: 1, 1, 96>}, {transform_indices = @transform_3, window_bounds = array<i64: 1, 4, 8, 32>}, {transform_indices = @transform_4, window_bounds = array<i64: 1, 1, 32>}, {transform_indices = @transform_5, window_bounds = array<i64: 1, 1, 32>}, {transform_indices = @transform_6, window_bounds = array<i64: 1, 1, 32>}, {transform_indices = @transform_7, window_bounds = array<i64: 1, 32, 128>}, {transform_indices = @transform_8, window_bounds = array<i64: 1, 1, 128>}, {transform_indices = @transform_9, window_bounds = array<i64: 1, 128, 32>}, {transform_indices = @transform_10, window_bounds = array<i64: 1, 1, 32>}, {transform_indices = @transform_11, window_bounds = array<i64: 1, 1, 32>}, {transform_indices = @transform_12, window_bounds = array<i64: 1, 1, 32>}, {transform_indices = @transform_13, window_bounds = array<i64: 1, 1, 32>}]} {
    %c0_i32 = arith.constant 0 : i32
    %0 = arith.cmpi eq, %arg1, %c0_i32 : i32
    %1 = arith.extui %0 : i1 to i32
    %c0_i32_0 = arith.constant 0 : i32
    %2 = arith.cmpi ne, %1, %c0_i32_0 : i32
    scf.if %2 {
      %c0_84 = arith.constant 0 : index
      %c0_85 = arith.constant 0 : index
      %c0_86 = arith.constant 0 : index
      %164 = vector.load %arg2[%c0_84, %c0_85, %c0_86] : memref<1x8x32xf32, #tpu.memory_space<vmem>>, vector<1x8x32xf32>
      %165 = vector.shape_cast %164 : vector<1x8x32xf32> to vector<8x32xf32>
      %c0_87 = arith.constant 0 : index
      %c0_88 = arith.constant 0 : index
      %166 = vector.load %arg16[%c0_87, %c0_88] : memref<8x32xf32, #tpu.memory_space<vmem>>, vector<8x32xf32>
      tpu.vector_store %arg16[%c0_87, %c0_88], %165 {strides = array<i32>} : memref<8x32xf32, #tpu.memory_space<vmem>>, vector<8x32xf32>,
    } else {
    }
    %c0 = arith.constant 0 : index
    %c0_1 = arith.constant 0 : index
    %3 = vector.load %arg16[%c0, %c0_1] : memref<8x32xf32, #tpu.memory_space<vmem>>, vector<8x32xf32>
    %c0_2 = arith.constant 0 : index
    %c0_3 = arith.constant 0 : index
    %c0_4 = arith.constant 0 : index
    %4 = vector.load %arg3[%c0_2, %c0_3, %c0_4] : memref<1x32x96xf32, #tpu.memory_space<vmem>>, vector<1x32x96xf32>
    %5 = vector.shape_cast %4 : vector<1x32x96xf32> to vector<32x96xf32>
    %cst = arith.constant dense<0.000000e+00> : vector<8x96xf32>
    %6 = tpu.matmul %3, %5, %cst {dimension_numbers = #tpu.dot_dimension_numbers<[1], [0], [0], [1], [0, 0, 1, 1], [], []>} : vector<8x32xf32>, vector<32x96xf32>, vector<8x96xf32> -> vector<8x96xf32>
    %c0_5 = arith.constant 0 : index
    %c0_6 = arith.constant 0 : index
    %c0_7 = arith.constant 0 : index
    %7 = vector.load %arg4[%c0_5, %c0_6, %c0_7] : memref<1x1x96xf32, #tpu.memory_space<vmem>>, vector<1x1x96xf32>
    %8 = vector.shape_cast %7 : vector<1x1x96xf32> to vector<1x96xf32>
    %9 = vector.broadcast %8 : vector<1x96xf32> to vector<8x96xf32>
    %10 = arith.addf %6, %9 : vector<8x96xf32>
    %11 = vector.extract_strided_slice %10 {offsets = [0, 0], sizes = [8, 8], strides = [1, 1]} : vector<8x96xf32> to vector<8x8xf32>
    %12 = vector.extract_strided_slice %10 {offsets = [0, 32], sizes = [8, 8], strides = [1, 1]} : vector<8x96xf32> to vector<8x8xf32>
    %13 = vector.extract_strided_slice %10 {offsets = [0, 64], sizes = [8, 8], strides = [1, 1]} : vector<8x96xf32> to vector<8x8xf32>
    %14 = tpu.transpose %12, [1, 0] : vector<8x8xf32> -> vector<8x8xf32>
    %cst_8 = arith.constant dense<0.000000e+00> : vector<8x8xf32>
    %15 = tpu.matmul %11, %14, %cst_8 {dimension_numbers = #tpu.dot_dimension_numbers<[1], [0], [0], [1], [0, 0, 1, 1], [], []>} : vector<8x8xf32>, vector<8x8xf32>, vector<8x8xf32> -> vector<8x8xf32>
    %cst_9 = arith.constant dense<0xFF800000> : vector<8xf32>
    %16 = vector.multi_reduction <maximumf>, %15, %cst_9 [1] : vector<8x8xf32> to vector<8xf32>
    %17 = vector.shape_cast %16 : vector<8xf32> to vector<8x1xf32>
    %18 = vector.broadcast %17 : vector<8x1xf32> to vector<8x8xf32>
    %19 = arith.subf %15, %18 : vector<8x8xf32>
    %20 = math.exp %19 : vector<8x8xf32>
    %cst_10 = arith.constant dense<0.000000e+00> : vector<8xf32>
    %21 = vector.multi_reduction <add>, %20, %cst_10 [1] : vector<8x8xf32> to vector<8xf32>
    %22 = vector.shape_cast %21 : vector<8xf32> to vector<8x1xf32>
    %23 = vector.broadcast %22 : vector<8x1xf32> to vector<8x8xf32>
    %24 = arith.divf %20, %23 : vector<8x8xf32>
    %cst_11 = arith.constant dense<0.000000e+00> : vector<8x8xf32>
    %25 = tpu.matmul %24, %13, %cst_11 {dimension_numbers = #tpu.dot_dimension_numbers<[1], [0], [0], [1], [0, 0, 1, 1], [], []>} : vector<8x8xf32>, vector<8x8xf32>, vector<8x8xf32> -> vector<8x8xf32>
    %c0_12 = arith.constant 0 : index
    %c0_13 = arith.constant 0 : index
    %c0_14 = arith.constant 0 : index
    %c0_15 = arith.constant 0 : index
    %26 = vector.load %arg5[%c0_12, %c0_13, %c0_14, %c0_15] : memref<1x4x8x32xf32, #tpu.memory_space<vmem>>, vector<1x1x8x32xf32>
    %27 = vector.shape_cast %26 : vector<1x1x8x32xf32> to vector<8x32xf32>
    %cst_16 = arith.constant dense<0.000000e+00> : vector<8x32xf32>
    %28 = tpu.matmul %25, %27, %cst_16 {dimension_numbers = #tpu.dot_dimension_numbers<[1], [0], [0], [1], [0, 0, 1, 1], [], []>} : vector<8x8xf32>, vector<8x32xf32>, vector<8x32xf32> -> vector<8x32xf32>
    %29 = vector.extract_strided_slice %10 {offsets = [0, 8], sizes = [8, 8], strides = [1, 1]} : vector<8x96xf32> to vector<8x8xf32>
    %30 = vector.extract_strided_slice %10 {offsets = [0, 40], sizes = [8, 8], strides = [1, 1]} : vector<8x96xf32> to vector<8x8xf32>
    %31 = vector.extract_strided_slice %10 {offsets = [0, 72], sizes = [8, 8], strides = [1, 1]} : vector<8x96xf32> to vector<8x8xf32>
    %32 = tpu.transpose %30, [1, 0] : vector<8x8xf32> -> vector<8x8xf32>
    %cst_17 = arith.constant dense<0.000000e+00> : vector<8x8xf32>
    %33 = tpu.matmul %29, %32, %cst_17 {dimension_numbers = #tpu.dot_dimension_numbers<[1], [0], [0], [1], [0, 0, 1, 1], [], []>} : vector<8x8xf32>, vector<8x8xf32>, vector<8x8xf32> -> vector<8x8xf32>
    %cst_18 = arith.constant dense<0xFF800000> : vector<8xf32>
    %34 = vector.multi_reduction <maximumf>, %33, %cst_18 [1] : vector<8x8xf32> to vector<8xf32>
    %35 = vector.shape_cast %34 : vector<8xf32> to vector<8x1xf32>
    %36 = vector.broadcast %35 : vector<8x1xf32> to vector<8x8xf32>
    %37 = arith.subf %33, %36 : vector<8x8xf32>
    %38 = math.exp %37 : vector<8x8xf32>
    %cst_19 = arith.constant dense<0.000000e+00> : vector<8xf32>
    %39 = vector.multi_reduction <add>, %38, %cst_19 [1] : vector<8x8xf32> to vector<8xf32>
    %40 = vector.shape_cast %39 : vector<8xf32> to vector<8x1xf32>
    %41 = vector.broadcast %40 : vector<8x1xf32> to vector<8x8xf32>
    %42 = arith.divf %38, %41 : vector<8x8xf32>
    %cst_20 = arith.constant dense<0.000000e+00> : vector<8x8xf32>
    %43 = tpu.matmul %42, %31, %cst_20 {dimension_numbers = #tpu.dot_dimension_numbers<[1], [0], [0], [1], [0, 0, 1, 1], [], []>} : vector<8x8xf32>, vector<8x8xf32>, vector<8x8xf32> -> vector<8x8xf32>
    %c0_21 = arith.constant 0 : index
    %c1 = arith.constant 1 : index
    %c0_22 = arith.constant 0 : index
    %c0_23 = arith.constant 0 : index
    %44 = vector.load %arg5[%c0_21, %c1, %c0_22, %c0_23] : memref<1x4x8x32xf32, #tpu.memory_space<vmem>>, vector<1x1x8x32xf32>
    %45 = vector.shape_cast %44 : vector<1x1x8x32xf32> to vector<8x32xf32>
    %cst_24 = arith.constant dense<0.000000e+00> : vector<8x32xf32>
    %46 = tpu.matmul %43, %45, %cst_24 {dimension_numbers = #tpu.dot_dimension_numbers<[1], [0], [0], [1], [0, 0, 1, 1], [], []>} : vector<8x8xf32>, vector<8x32xf32>, vector<8x32xf32> -> vector<8x32xf32>
    %47 = arith.addf %28, %46 : vector<8x32xf32>
    %48 = vector.extract_strided_slice %10 {offsets = [0, 16], sizes = [8, 8], strides = [1, 1]} : vector<8x96xf32> to vector<8x8xf32>
    %49 = vector.extract_strided_slice %10 {offsets = [0, 48], sizes = [8, 8], strides = [1, 1]} : vector<8x96xf32> to vector<8x8xf32>
    %50 = vector.extract_strided_slice %10 {offsets = [0, 80], sizes = [8, 8], strides = [1, 1]} : vector<8x96xf32> to vector<8x8xf32>
    %51 = tpu.transpose %49, [1, 0] : vector<8x8xf32> -> vector<8x8xf32>
    %cst_25 = arith.constant dense<0.000000e+00> : vector<8x8xf32>
    %52 = tpu.matmul %48, %51, %cst_25 {dimension_numbers = #tpu.dot_dimension_numbers<[1], [0], [0], [1], [0, 0, 1, 1], [], []>} : vector<8x8xf32>, vector<8x8xf32>, vector<8x8xf32> -> vector<8x8xf32>
    %cst_26 = arith.constant dense<0xFF800000> : vector<8xf32>
    %53 = vector.multi_reduction <maximumf>, %52, %cst_26 [1] : vector<8x8xf32> to vector<8xf32>
    %54 = vector.shape_cast %53 : vector<8xf32> to vector<8x1xf32>
    %55 = vector.broadcast %54 : vector<8x1xf32> to vector<8x8xf32>
    %56 = arith.subf %52, %55 : vector<8x8xf32>
    %57 = math.exp %56 : vector<8x8xf32>
    %cst_27 = arith.constant dense<0.000000e+00> : vector<8xf32>
    %58 = vector.multi_reduction <add>, %57, %cst_27 [1] : vector<8x8xf32> to vector<8xf32>
    %59 = vector.shape_cast %58 : vector<8xf32> to vector<8x1xf32>
    %60 = vector.broadcast %59 : vector<8x1xf32> to vector<8x8xf32>
    %61 = arith.divf %57, %60 : vector<8x8xf32>
    %cst_28 = arith.constant dense<0.000000e+00> : vector<8x8xf32>
    %62 = tpu.matmul %61, %50, %cst_28 {dimension_numbers = #tpu.dot_dimension_numbers<[1], [0], [0], [1], [0, 0, 1, 1], [], []>} : vector<8x8xf32>, vector<8x8xf32>, vector<8x8xf32> -> vector<8x8xf32>
    %c0_29 = arith.constant 0 : index
    %c2 = arith.constant 2 : index
    %c0_30 = arith.constant 0 : index
    %c0_31 = arith.constant 0 : index
    %63 = vector.load %arg5[%c0_29, %c2, %c0_30, %c0_31] : memref<1x4x8x32xf32, #tpu.memory_space<vmem>>, vector<1x1x8x32xf32>
    %64 = vector.shape_cast %63 : vector<1x1x8x32xf32> to vector<8x32xf32>
    %cst_32 = arith.constant dense<0.000000e+00> : vector<8x32xf32>
    %65 = tpu.matmul %62, %64, %cst_32 {dimension_numbers = #tpu.dot_dimension_numbers<[1], [0], [0], [1], [0, 0, 1, 1], [], []>} : vector<8x8xf32>, vector<8x32xf32>, vector<8x32xf32> -> vector<8x32xf32>
    %66 = arith.addf %47, %65 : vector<8x32xf32>
    %67 = vector.extract_strided_slice %10 {offsets = [0, 24], sizes = [8, 8], strides = [1, 1]} : vector<8x96xf32> to vector<8x8xf32>
    %68 = vector.extract_strided_slice %10 {offsets = [0, 56], sizes = [8, 8], strides = [1, 1]} : vector<8x96xf32> to vector<8x8xf32>
    %69 = vector.extract_strided_slice %10 {offsets = [0, 88], sizes = [8, 8], strides = [1, 1]} : vector<8x96xf32> to vector<8x8xf32>
    %70 = tpu.transpose %68, [1, 0] : vector<8x8xf32> -> vector<8x8xf32>
    %cst_33 = arith.constant dense<0.000000e+00> : vector<8x8xf32>
    %71 = tpu.matmul %67, %70, %cst_33 {dimension_numbers = #tpu.dot_dimension_numbers<[1], [0], [0], [1], [0, 0, 1, 1], [], []>} : vector<8x8xf32>, vector<8x8xf32>, vector<8x8xf32> -> vector<8x8xf32>
    %cst_34 = arith.constant dense<0xFF800000> : vector<8xf32>
    %72 = vector.multi_reduction <maximumf>, %71, %cst_34 [1] : vector<8x8xf32> to vector<8xf32>
    %73 = vector.shape_cast %72 : vector<8xf32> to vector<8x1xf32>
    %74 = vector.broadcast %73 : vector<8x1xf32> to vector<8x8xf32>
    %75 = arith.subf %71, %74 : vector<8x8xf32>
    %76 = math.exp %75 : vector<8x8xf32>
    %cst_35 = arith.constant dense<0.000000e+00> : vector<8xf32>
    %77 = vector.multi_reduction <add>, %76, %cst_35 [1] : vector<8x8xf32> to vector<8xf32>
    %78 = vector.shape_cast %77 : vector<8xf32> to vector<8x1xf32>
    %79 = vector.broadcast %78 : vector<8x1xf32> to vector<8x8xf32>
    %80 = arith.divf %76, %79 : vector<8x8xf32>
    %cst_36 = arith.constant dense<0.000000e+00> : vector<8x8xf32>
    %81 = tpu.matmul %80, %69, %cst_36 {dimension_numbers = #tpu.dot_dimension_numbers<[1], [0], [0], [1], [0, 0, 1, 1], [], []>} : vector<8x8xf32>, vector<8x8xf32>, vector<8x8xf32> -> vector<8x8xf32>
    %c0_37 = arith.constant 0 : index
    %c3 = arith.constant 3 : index
    %c0_38 = arith.constant 0 : index
    %c0_39 = arith.constant 0 : index
    %82 = vector.load %arg5[%c0_37, %c3, %c0_38, %c0_39] : memref<1x4x8x32xf32, #tpu.memory_space<vmem>>, vector<1x1x8x32xf32>
    %83 = vector.shape_cast %82 : vector<1x1x8x32xf32> to vector<8x32xf32>
    %cst_40 = arith.constant dense<0.000000e+00> : vector<8x32xf32>
    %84 = tpu.matmul %81, %83, %cst_40 {dimension_numbers = #tpu.dot_dimension_numbers<[1], [0], [0], [1], [0, 0, 1, 1], [], []>} : vector<8x8xf32>, vector<8x32xf32>, vector<8x32xf32> -> vector<8x32xf32>
    %85 = arith.addf %66, %84 : vector<8x32xf32>
    %c0_41 = arith.constant 0 : index
    %c0_42 = arith.constant 0 : index
    %c0_43 = arith.constant 0 : index
    %86 = vector.load %arg6[%c0_41, %c0_42, %c0_43] : memref<1x1x32xf32, #tpu.memory_space<vmem>>, vector<1x1x32xf32>
    %87 = vector.shape_cast %86 : vector<1x1x32xf32> to vector<1x32xf32>
    %88 = vector.broadcast %87 : vector<1x32xf32> to vector<8x32xf32>
    %89 = arith.addf %85, %88 : vector<8x32xf32>
    %90 = arith.addf %3, %89 : vector<8x32xf32>
    %c0_44 = arith.constant 0 : index
    %c0_45 = arith.constant 0 : index
    %c0_46 = arith.constant 0 : index
    %91 = vector.load %arg7[%c0_44, %c0_45, %c0_46] : memref<1x1x32xf32, #tpu.memory_space<vmem>>, vector<1x1x32xf32>
    %92 = vector.shape_cast %91 : vector<1x1x32xf32> to vector<1x32xf32>
    %c0_47 = arith.constant 0 : index
    %c0_48 = arith.constant 0 : index
    %c0_49 = arith.constant 0 : index
    %93 = vector.load %arg8[%c0_47, %c0_48, %c0_49] : memref<1x1x32xf32, #tpu.memory_space<vmem>>, vector<1x1x32xf32>
    %94 = vector.shape_cast %93 : vector<1x1x32xf32> to vector<1x32xf32>
    %cst_50 = arith.constant dense<0.000000e+00> : vector<8xf32>
    %95 = vector.multi_reduction <add>, %90, %cst_50 [1] : vector<8x32xf32> to vector<8xf32>
    %96 = vector.shape_cast %95 : vector<8xf32> to vector<8x1xf32>
    %cst_51 = arith.constant 3.200000e+01 : f32
    %97 = vector.broadcast %cst_51 : f32 to vector<8x1xf32>
    %98 = arith.divf %96, %97 : vector<8x1xf32>
    %99 = vector.broadcast %98 : vector<8x1xf32> to vector<8x32xf32>
    %100 = arith.subf %90, %99 : vector<8x32xf32>
    %101 = arith.mulf %100, %100 : vector<8x32xf32>
    %cst_52 = arith.constant dense<0.000000e+00> : vector<8xf32>
    %102 = vector.multi_reduction <add>, %101, %cst_52 [1] : vector<8x32xf32> to vector<8xf32>
    %103 = vector.shape_cast %102 : vector<8xf32> to vector<8x1xf32>
    %cst_53 = arith.constant 3.200000e+01 : f32
    %104 = vector.broadcast %cst_53 : f32 to vector<8x1xf32>
    %105 = arith.divf %103, %104 : vector<8x1xf32>
    %cst_54 = arith.constant 9.99999997E-7 : f32
    %106 = vector.broadcast %cst_54 : f32 to vector<8x1xf32>
    %107 = arith.addf %105, %106 : vector<8x1xf32>
    %108 = math.rsqrt %107 : vector<8x1xf32>
    %109 = vector.broadcast %98 : vector<8x1xf32> to vector<8x32xf32>
    %110 = arith.subf %90, %109 : vector<8x32xf32>
    %111 = vector.broadcast %108 : vector<8x1xf32> to vector<8x32xf32>
    %112 = arith.mulf %110, %111 : vector<8x32xf32>
    %113 = vector.broadcast %92 : vector<1x32xf32> to vector<8x32xf32>
    %114 = arith.mulf %112, %113 : vector<8x32xf32>
    %115 = vector.broadcast %94 : vector<1x32xf32> to vector<8x32xf32>
    %116 = arith.addf %114, %115 : vector<8x32xf32>
    %c0_55 = arith.constant 0 : index
    %c0_56 = arith.constant 0 : index
    %c0_57 = arith.constant 0 : index
    %117 = vector.load %arg9[%c0_55, %c0_56, %c0_57] : memref<1x32x128xf32, #tpu.memory_space<vmem>>, vector<1x32x128xf32>
    %118 = vector.shape_cast %117 : vector<1x32x128xf32> to vector<32x128xf32>
    %cst_58 = arith.constant dense<0.000000e+00> : vector<8x128xf32>
    %119 = tpu.matmul %116, %118, %cst_58 {dimension_numbers = #tpu.dot_dimension_numbers<[1], [0], [0], [1], [0, 0, 1, 1], [], []>} : vector<8x32xf32>, vector<32x128xf32>, vector<8x128xf32> -> vector<8x128xf32>
    %c0_59 = arith.constant 0 : index
    %c0_60 = arith.constant 0 : index
    %c0_61 = arith.constant 0 : index
    %120 = vector.load %arg10[%c0_59, %c0_60, %c0_61] : memref<1x1x128xf32, #tpu.memory_space<vmem>>, vector<1x1x128xf32>
    %121 = vector.shape_cast %120 : vector<1x1x128xf32> to vector<1x128xf32>
    %122 = vector.broadcast %121 : vector<1x128xf32> to vector<8x128xf32>
    %123 = arith.addf %119, %122 : vector<8x128xf32>
    %cst_62 = arith.constant 0.000000e+00 : f32
    %124 = vector.broadcast %cst_62 : f32 to vector<8x128xf32>
    %125 = arith.maximumf %123, %124 : vector<8x128xf32>
    %c0_63 = arith.constant 0 : index
    %c0_64 = arith.constant 0 : index
    %c0_65 = arith.constant 0 : index
    %126 = vector.load %arg11[%c0_63, %c0_64, %c0_65] : memref<1x128x32xf32, #tpu.memory_space<vmem>>, vector<1x128x32xf32>
    %127 = vector.shape_cast %126 : vector<1x128x32xf32> to vector<128x32xf32>
    %cst_66 = arith.constant dense<0.000000e+00> : vector<8x32xf32>
    %128 = tpu.matmul %125, %127, %cst_66 {dimension_numbers = #tpu.dot_dimension_numbers<[1], [0], [0], [1], [0, 0, 1, 1], [], []>} : vector<8x128xf32>, vector<128x32xf32>, vector<8x32xf32> -> vector<8x32xf32>
    %c0_67 = arith.constant 0 : index
    %c0_68 = arith.constant 0 : index
    %c0_69 = arith.constant 0 : index
    %129 = vector.load %arg12[%c0_67, %c0_68, %c0_69] : memref<1x1x32xf32, #tpu.memory_space<vmem>>, vector<1x1x32xf32>
    %130 = vector.shape_cast %129 : vector<1x1x32xf32> to vector<1x32xf32>
    %131 = vector.broadcast %130 : vector<1x32xf32> to vector<8x32xf32>
    %132 = arith.addf %128, %131 : vector<8x32xf32>
    %133 = arith.addf %116, %132 : vector<8x32xf32>
    %c0_70 = arith.constant 0 : index
    %c0_71 = arith.constant 0 : index
    %c0_72 = arith.constant 0 : index
    %134 = vector.load %arg13[%c0_70, %c0_71, %c0_72] : memref<1x1x32xf32, #tpu.memory_space<vmem>>, vector<1x1x32xf32>
    %135 = vector.shape_cast %134 : vector<1x1x32xf32> to vector<1x32xf32>
    %c0_73 = arith.constant 0 : index
    %c0_74 = arith.constant 0 : index
    %c0_75 = arith.constant 0 : index
    %136 = vector.load %arg14[%c0_73, %c0_74, %c0_75] : memref<1x1x32xf32, #tpu.memory_space<vmem>>, vector<1x1x32xf32>
    %137 = vector.shape_cast %136 : vector<1x1x32xf32> to vector<1x32xf32>
    %cst_76 = arith.constant dense<0.000000e+00> : vector<8xf32>
    %138 = vector.multi_reduction <add>, %133, %cst_76 [1] : vector<8x32xf32> to vector<8xf32>
    %139 = vector.shape_cast %138 : vector<8xf32> to vector<8x1xf32>
    %cst_77 = arith.constant 3.200000e+01 : f32
    %140 = vector.broadcast %cst_77 : f32 to vector<8x1xf32>
    %141 = arith.divf %139, %140 : vector<8x1xf32>
    %142 = vector.broadcast %141 : vector<8x1xf32> to vector<8x32xf32>
    %143 = arith.subf %133, %142 : vector<8x32xf32>
    %144 = arith.mulf %143, %143 : vector<8x32xf32>
    %cst_78 = arith.constant dense<0.000000e+00> : vector<8xf32>
    %145 = vector.multi_reduction <add>, %144, %cst_78 [1] : vector<8x32xf32> to vector<8xf32>
    %146 = vector.shape_cast %145 : vector<8xf32> to vector<8x1xf32>
    %cst_79 = arith.constant 3.200000e+01 : f32
    %147 = vector.broadcast %cst_79 : f32 to vector<8x1xf32>
    %148 = arith.divf %146, %147 : vector<8x1xf32>
    %cst_80 = arith.constant 9.99999997E-7 : f32
    %149 = vector.broadcast %cst_80 : f32 to vector<8x1xf32>
    %150 = arith.addf %148, %149 : vector<8x1xf32>
    %151 = math.rsqrt %150 : vector<8x1xf32>
    %152 = vector.broadcast %141 : vector<8x1xf32> to vector<8x32xf32>
    %153 = arith.subf %133, %152 : vector<8x32xf32>
    %154 = vector.broadcast %151 : vector<8x1xf32> to vector<8x32xf32>
    %155 = arith.mulf %153, %154 : vector<8x32xf32>
    %156 = vector.broadcast %135 : vector<1x32xf32> to vector<8x32xf32>
    %157 = arith.mulf %155, %156 : vector<8x32xf32>
    %158 = vector.broadcast %137 : vector<1x32xf32> to vector<8x32xf32>
    %159 = arith.addf %157, %158 : vector<8x32xf32>
    %c0_81 = arith.constant 0 : index
    %c0_82 = arith.constant 0 : index
    %160 = vector.load %arg16[%c0_81, %c0_82] : memref<8x32xf32, #tpu.memory_space<vmem>>, vector<8x32xf32>
    tpu.vector_store %arg16[%c0_81, %c0_82], %159 {strides = array<i32>} : memref<8x32xf32, #tpu.memory_space<vmem>>, vector<8x32xf32>,
    %c1_i32 = arith.constant 1 : i32
    %161 = arith.cmpi eq, %arg1, %c1_i32 : i32
    %162 = arith.extui %161 : i1 to i32
    %c0_i32_83 = arith.constant 0 : i32
    %163 = arith.cmpi ne, %162, %c0_i32_83 : i32
    scf.if %163 {
      %cst_84 = arith.constant dense<0.000000e+00> : vector<32xf32>
      %164 = vector.multi_reduction <add>, %159, %cst_84 [0] : vector<8x32xf32> to vector<32xf32>
      %165 = vector.shape_cast %164 : vector<32xf32> to vector<1x32xf32>
      %cst_85 = arith.constant 8.000000e+00 : f32
      %166 = vector.broadcast %cst_85 : f32 to vector<1x32xf32>
      %167 = arith.divf %165, %166 : vector<1x32xf32>
      %c0_86 = arith.constant 0 : index
      %c0_87 = arith.constant 0 : index
      %c0_88 = arith.constant 0 : index
      %168 = vector.load %arg15[%c0_86, %c0_87, %c0_88] : memref<1x1x32xf32, #tpu.memory_space<vmem>>, vector<1x1x32xf32>
      %169 = vector.shape_cast %168 : vector<1x1x32xf32> to vector<1x32xf32>
      %170 = vector.shape_cast %167 : vector<1x32xf32> to vector<1x1x32xf32>
      tpu.vector_store %arg15[%c0_86, %c0_87, %c0_88], %170 {strides = array<i32>} : memref<1x1x32xf32, #tpu.memory_space<vmem>>, vector<1x1x32xf32>,
    } else {
    }
    return
  }
  func.func @transform_0(%arg0: i32, %arg1: i32) -> (i32, i32, i32) {
    %c0_i32 = arith.constant 0 : i32
    %c0_i32_0 = arith.constant 0 : i32
    %c0_i32_1 = arith.constant 0 : i32
    return %arg0, %c0_i32, %c0_i32_0 : i32, i32, i32
  }
  func.func @transform_1(%arg0: i32, %arg1: i32) -> (i32, i32, i32) {
    %c0_i32 = arith.constant 0 : i32
    %c0_i32_0 = arith.constant 0 : i32
    %c0_i32_1 = arith.constant 0 : i32
    return %arg1, %c0_i32, %c0_i32_0 : i32, i32, i32
  }
  func.func @transform_2(%arg0: i32, %arg1: i32) -> (i32, i32, i32) {
    %c0_i32 = arith.constant 0 : i32
    %c0_i32_0 = arith.constant 0 : i32
    %c0_i32_1 = arith.constant 0 : i32
    return %arg1, %c0_i32, %c0_i32_0 : i32, i32, i32
  }
  func.func @transform_3(%arg0: i32, %arg1: i32) -> (i32, i32, i32, i32) {
    %c0_i32 = arith.constant 0 : i32
    %c0_i32_0 = arith.constant 0 : i32
    %c0_i32_1 = arith.constant 0 : i32
    %c0_i32_2 = arith.constant 0 : i32
    return %arg1, %c0_i32, %c0_i32_0, %c0_i32_1 : i32, i32, i32, i32
  }
  func.func @transform_4(%arg0: i32, %arg1: i32) -> (i32, i32, i32) {
    %c0_i32 = arith.constant 0 : i32
    %c0_i32_0 = arith.constant 0 : i32
    %c0_i32_1 = arith.constant 0 : i32
    return %arg1, %c0_i32, %c0_i32_0 : i32, i32, i32
  }
  func.func @transform_5(%arg0: i32, %arg1: i32) -> (i32, i32, i32) {
    %c0_i32 = arith.constant 0 : i32
    %c0_i32_0 = arith.constant 0 : i32
    %c0_i32_1 = arith.constant 0 : i32
    return %arg1, %c0_i32, %c0_i32_0 : i32, i32, i32
  }
  func.func @transform_6(%arg0: i32, %arg1: i32) -> (i32, i32, i32) {
    %c0_i32 = arith.constant 0 : i32
    %c0_i32_0 = arith.constant 0 : i32
    %c0_i32_1 = arith.constant 0 : i32
    return %arg1, %c0_i32, %c0_i32_0 : i32, i32, i32
  }
  func.func @transform_7(%arg0: i32, %arg1: i32) -> (i32, i32, i32) {
    %c0_i32 = arith.constant 0 : i32
    %c0_i32_0 = arith.constant 0 : i32
    %c0_i32_1 = arith.constant 0 : i32
    return %arg1, %c0_i32, %c0_i32_0 : i32, i32, i32
  }
  func.func @transform_8(%arg0: i32, %arg1: i32) -> (i32, i32, i32) {
    %c0_i32 = arith.constant 0 : i32
    %c0_i32_0 = arith.constant 0 : i32
    %c0_i32_1 = arith.constant 0 : i32
    return %arg1, %c0_i32, %c0_i32_0 : i32, i32, i32
  }
  func.func @transform_9(%arg0: i32, %arg1: i32) -> (i32, i32, i32) {
    %c0_i32 = arith.constant 0 : i32
    %c0_i32_0 = arith.constant 0 : i32
    %c0_i32_1 = arith.constant 0 : i32
    return %arg1, %c0_i32, %c0_i32_0 : i32, i32, i32
  }
  func.func @transform_10(%arg0: i32, %arg1: i32) -> (i32, i32, i32) {
    %c0_i32 = arith.constant 0 : i32
    %c0_i32_0 = arith.constant 0 : i32
    %c0_i32_1 = arith.constant 0 : i32
    return %arg1, %c0_i32, %c0_i32_0 : i32, i32, i32
  }
  func.func @transform_11(%arg0: i32, %arg1: i32) -> (i32, i32, i32) {
    %c0_i32 = arith.constant 0 : i32
    %c0_i32_0 = arith.constant 0 : i32
    %c0_i32_1 = arith.constant 0 : i32
    return %arg1, %c0_i32, %c0_i32_0 : i32, i32, i32
  }
  func.func @transform_12(%arg0: i32, %arg1: i32) -> (i32, i32, i32) {
    %c0_i32 = arith.constant 0 : i32
    %c0_i32_0 = arith.constant 0 : i32
    %c0_i32_1 = arith.constant 0 : i32
    return %arg1, %c0_i32, %c0_i32_0 : i32, i32, i32
  }
  func.func @transform_13(%arg0: i32, %arg1: i32) -> (i32, i32, i32) {
    %c0_i32 = arith.constant 0 : i32
    %c0_i32_0 = arith.constant 0 : i32
    %c0_i32_1 = arith.constant 0 : i32
    return %arg0, %c0_i32, %c0_i32_0 : i32, i32, i32
  }
}

</mosaic_0001>

<llo_original>
// kernel: tpu_custom_call.1
$region0: #{tpu_custom_call.1}
  #allocation0 [shape = 'u32[]', space=smem, size = 0x4, offset = 0x4, fixed_abs, tag = 'smem constant byte address 0x4 - core index']
  #allocation1 [shape = 'u32[144,128]{1,0:T(1,128)}', space=vmem, size = 0x12000, scoped, tag = 'internal scratch']
  #allocation2 [shape = 'f32[8,32]{1,0:T(8,128)}', space=vmem, size = 0x1000, scoped, tag = 'scratch operand']
  %s0 = inlined_call_operand.vmem [shape: f32[2,8,32], index: 0, kind: input, shape index: {}]
  %s1 = inlined_call_operand.vmem [shape: f32[2,32,96], index: 1, kind: input, shape index: {}]
  %s2 = inlined_call_operand.vmem [shape: f32[2,1,96], index: 2, kind: input, shape index: {}]
  %s3 = inlined_call_operand.vmem [shape: f32[2,4,8,32], index: 3, kind: input, shape index: {}]
  %s4 = inlined_call_operand.vmem [shape: f32[2,1,32], index: 4, kind: input, shape index: {}]
  %s5 = inlined_call_operand.vmem [shape: f32[2,1,32], index: 5, kind: input, shape index: {}]
  %s6 = inlined_call_operand.vmem [shape: f32[2,1,32], index: 6, kind: input, shape index: {}]
  %s7 = inlined_call_operand.vmem [shape: f32[2,32,128], index: 7, kind: input, shape index: {}]
  %s8 = inlined_call_operand.vmem [shape: f32[2,1,128], index: 8, kind: input, shape index: {}]
  %s9 = inlined_call_operand.vmem [shape: f32[2,128,32], index: 9, kind: input, shape index: {}]
  %s10 = inlined_call_operand.vmem [shape: f32[2,1,32], index: 10, kind: input, shape index: {}]
  %s11 = inlined_call_operand.vmem [shape: f32[2,1,32], index: 11, kind: input, shape index: {}]
  %s12 = inlined_call_operand.vmem [shape: f32[2,1,32], index: 12, kind: input, shape index: {}]
  %s13 = inlined_call_operand.hbm [shape: f32[2,1,32], index: 13, kind: output, shape index: {}]
  %s14 = sld [smem:[#allocation0]]
  $region93: #{tpu_custom_call.1} parent=0
    _
  %s16 = ssub.s32 1, %s14
  %s17 = scalar_select 0, %s16, %s14
  $region1: #{tpu_custom_call.1} parent=0
    #allocation3 [shape = 'u8[1024]{0}', space=vmem, size = 0x400, scoped, tag = 'output window, operand 0']
    #allocation4 [shape = 's32[2]{0}', space=sflag, size = 0x8, scoped, tag = 'scoped memory for tpu_custom_call.1']
    %18 = vsyncpa [#allocation4], 0
    %s19 = scalar_lea.sflag [#allocation4], 1
    %20 = vsyncpa %s19, 0
    loop: start=0, step=1, limit=6
    $region2: #{tpu_custom_call.1} parent=1 // loop_pre_header
      _
    $region3: #{tpu_custom_call.1} parent=1 // loop_header
      %s22 = sphi 0, %s26
      %p23 = scmp.ge.s32.totalorder %s22, 6
      %s29 = sphi 0, %s41
      %s30 = sphi 0, %s37
      %s31 = sphi 0, %s29
      %s32 = sphi 0, %s30
      %s33 = sphi 0, %s31
      %s34 = sphi 0, %s32
      %s44 = sphi 0, %s46
      %s47 = sphi 0, %s44
      %s48 = sphi 0, %s47
      %s64 = sphi 0, %s48
      %s70 = sphi 0, %s72
      %s73 = sphi 0, %s70
      %s74 = sphi 0, %s73
      %s90 = sphi 0, %s74
      %s96 = sphi 0, %s98
      %s99 = sphi 0, %s96
      %s100 = sphi 0, %s99
      %s116 = sphi 0, %s100
      %s122 = sphi 0, %s124
      %s125 = sphi 0, %s122
      %s126 = sphi 0, %s125
      %s142 = sphi 0, %s126
      %s148 = sphi 0, %s150
      %s151 = sphi 0, %s148
      %s152 = sphi 0, %s151
      %s168 = sphi 0, %s152
      %s174 = sphi 0, %s176
      %s177 = sphi 0, %s174
      %s178 = sphi 0, %s177
      %s194 = sphi 0, %s178
      %s200 = sphi 0, %s202
      %s203 = sphi 0, %s200
      %s204 = sphi 0, %s203
      %s220 = sphi 0, %s204
      %s226 = sphi 0, %s228
      %s229 = sphi 0, %s226
      %s230 = sphi 0, %s229
      %s246 = sphi 0, %s230
      %s252 = sphi 0, %s254
      %s255 = sphi 0, %s252
      %s256 = sphi 0, %s255
      %s272 = sphi 0, %s256
      %s278 = sphi 0, %s280
      %s281 = sphi 0, %s278
      %s282 = sphi 0, %s281
      %s298 = sphi 0, %s282
      %s304 = sphi 0, %s306
      %s307 = sphi 0, %s304
      %s308 = sphi 0, %s307
      %s324 = sphi 0, %s308
      %s330 = sphi 0, %s332
      %s333 = sphi 0, %s330
      %s334 = sphi 0, %s333
      %s350 = sphi 0, %s334
      %s356 = sphi 0, %s358
      %s359 = sphi 0, %s356
      %s360 = sphi 0, %s359
      %s376 = sphi 0, %s360
      %s382 = sphi 0, %s384
      %s385 = sphi 0, %s382
      %s386 = sphi 0, %s385
      %s402 = sphi 0, %s386
    $region4: #{tpu_custom_call.1} parent=1 // loop_header_branch
      %25 = sbr.rel (%p23) target = $region8
    $region5: #{tpu_custom_call.1} parent=1 // loop_body
      %s27 = ssub.s32 %s22, 1
      %s28 = ssub.s32 %s22, 2
      %s35 = sadd.s32 1, %s30
      %p36 = scmp.ge.s32.totalorder %s35, 2
      %s37 = scalar_select %p36, 0, %s35
      %s38 = sadd.s32 1, %s29
      %s39 = scalar_select %p36, %s38, %s29
      %p40 = scmp.ge.s32.totalorder %s39, 2
      %s41 = scalar_select %p40, 0, %s39
      %s42 = ssub.s32 %s29, %s41
      %p43 = scmp.eq.s32.totalorder %s42, 0
      %s45 = sadd.s32 %s44, 1
      %s46 = scalar_select %p43, %s44, %s45
      %p49 = pneg %p43
      %p50 = scmp.eq.s32.totalorder %s22, 3
      %p51 = por %p49, %p50
      %p52 = scmp.ne.s32.totalorder %s44, %s47
      %p53 = scmp.eq.s32.totalorder %s22, 0
      %p54 = por %p52, %p53
      %p55 = scmp.ne.s32.totalorder %s44, %s47
      %p56 = scmp.eq.s32.totalorder %s27, 3
      %p57 = por %p55, %p56
      %p58 = scmp.ne.s32.totalorder %s47, %s48
      %p59 = scmp.eq.s32.totalorder %s27, 0
      %p60 = por %p58, %p59
      %p61 = scmp.ne.s32.totalorder %s47, %s48
      %p62 = scmp.eq.s32.totalorder %s28, 3
      %p63 = por %p61, %p62
      %p65 = scmp.ne.s32.totalorder %s48, %s64
      %p66 = scmp.eq.s32.totalorder %s28, 0
      %p67 = por %p65, %p66
      %s68 = ssub.s32 %s30, %s37
      %p69 = scmp.eq.s32.totalorder %s68, 0
      %s71 = sadd.s32 %s70, 1
      %s72 = scalar_select %p69, %s70, %s71
      %p75 = pneg %p69
      %p76 = scmp.eq.s32.totalorder %s22, 3
      %p77 = por %p75, %p76
      %p78 = scmp.ne.s32.totalorder %s70, %s73
      %p79 = scmp.eq.s32.totalorder %s22, 0
      %p80 = por %p78, %p79
      %p81 = scmp.ne.s32.totalorder %s70, %s73
      %p82 = scmp.eq.s32.totalorder %s27, 3
      %p83 = por %p81, %p82
      %p84 = scmp.ne.s32.totalorder %s73, %s74
      %p85 = scmp.eq.s32.totalorder %s27, 0
      %p86 = por %p84, %p85
      %p87 = scmp.ne.s32.totalorder %s73, %s74
      %p88 = scmp.eq.s32.totalorder %s28, 3
      %p89 = por %p87, %p88
      %p91 = scmp.ne.s32.totalorder %s74, %s90
      %p92 = scmp.eq.s32.totalorder %s28, 0
      %p93 = por %p91, %p92
      %s94 = ssub.s32 %s30, %s37
      %p95 = scmp.eq.s32.totalorder %s94, 0
      %s97 = sadd.s32 %s96, 1
      %s98 = scalar_select %p95, %s96, %s97
      %p101 = pneg %p95
      %p102 = scmp.eq.s32.totalorder %s22, 3
      %p103 = por %p101, %p102
      %p104 = scmp.ne.s32.totalorder %s96, %s99
      %p105 = scmp.eq.s32.totalorder %s22, 0
      %p106 = por %p104, %p105
      %p107 = scmp.ne.s32.totalorder %s96, %s99
      %p108 = scmp.eq.s32.totalorder %s27, 3
      %p109 = por %p107, %p108
      %p110 = scmp.ne.s32.totalorder %s99, %s100
      %p111 = scmp.eq.s32.totalorder %s27, 0
      %p112 = por %p110, %p111
      %p113 = scmp.ne.s32.totalorder %s99, %s100
      %p114 = scmp.eq.s32.totalorder %s28, 3
      %p115 = por %p113, %p114
      %p117 = scmp.ne.s32.totalorder %s100, %s116
      %p118 = scmp.eq.s32.totalorder %s28, 0
      %p119 = por %p117, %p118
      %s120 = ssub.s32 %s30, %s37
      %p121 = scmp.eq.s32.totalorder %s120, 0
      %s123 = sadd.s32 %s122, 1
      %s124 = scalar_select %p121, %s122, %s123
      %p127 = pneg %p121
      %p128 = scmp.eq.s32.totalorder %s22, 3
      %p129 = por %p127, %p128
      %p130 = scmp.ne.s32.totalorder %s122, %s125
      %p131 = scmp.eq.s32.totalorder %s22, 0
      %p132 = por %p130, %p131
      %p133 = scmp.ne.s32.totalorder %s122, %s125
      %p134 = scmp.eq.s32.totalorder %s27, 3
      %p135 = por %p133, %p134
      %p136 = scmp.ne.s32.totalorder %s125, %s126
      %p137 = scmp.eq.s32.totalorder %s27, 0
      %p138 = por %p136, %p137
      %p139 = scmp.ne.s32.totalorder %s125, %s126
      %p140 = scmp.eq.s32.totalorder %s28, 3
      %p141 = por %p139, %p140
      %p143 = scmp.ne.s32.totalorder %s126, %s142
      %p144 = scmp.eq.s32.totalorder %s28, 0
      %p145 = por %p143, %p144
      %s146 = ssub.s32 %s30, %s37
      %p147 = scmp.eq.s32.totalorder %s146, 0
      %s149 = sadd.s32 %s148, 1
      %s150 = scalar_select %p147, %s148, %s149
      %p153 = pneg %p147
      %p154 = scmp.eq.s32.totalorder %s22, 3
      %p155 = por %p153, %p154
      %p156 = scmp.ne.s32.totalorder %s148, %s151
      %p157 = scmp.eq.s32.totalorder %s22, 0
      %p158 = por %p156, %p157
      %p159 = scmp.ne.s32.totalorder %s148, %s151
      %p160 = scmp.eq.s32.totalorder %s27, 3
      %p161 = por %p159, %p160
      %p162 = scmp.ne.s32.totalorder %s151, %s152
      %p163 = scmp.eq.s32.totalorder %s27, 0
      %p164 = por %p162, %p163
      %p165 = scmp.ne.s32.totalorder %s151, %s152
      %p166 = scmp.eq.s32.totalorder %s28, 3
      %p167 = por %p165, %p166
      %p169 = scmp.ne.s32.totalorder %s152, %s168
      %p170 = scmp.eq.s32.totalorder %s28, 0
      %p171 = por %p169, %p170
      %s172 = ssub.s32 %s30, %s37
      %p173 = scmp.eq.s32.totalorder %s172, 0
      %s175 = sadd.s32 %s174, 1
      %s176 = scalar_select %p173, %s174, %s175
      %p179 = pneg %p173
      %p180 = scmp.eq.s32.totalorder %s22, 3
      %p181 = por %p179, %p180
      %p182 = scmp.ne.s32.totalorder %s174, %s177
      %p183 = scmp.eq.s32.totalorder %s22, 0
      %p184 = por %p182, %p183
      %p185 = scmp.ne.s32.totalorder %s174, %s177
      %p186 = scmp.eq.s32.totalorder %s27, 3
      %p187 = por %p185, %p186
      %p188 = scmp.ne.s32.totalorder %s177, %s178
      %p189 = scmp.eq.s32.totalorder %s27, 0
      %p190 = por %p188, %p189
      %p191 = scmp.ne.s32.totalorder %s177, %s178
      %p192 = scmp.eq.s32.totalorder %s28, 3
      %p193 = por %p191, %p192
      %p195 = scmp.ne.s32.totalorder %s178, %s194
      %p196 = scmp.eq.s32.totalorder %s28, 0
      %p197 = por %p195, %p196
      %s198 = ssub.s32 %s30, %s37
      %p199 = scmp.eq.s32.totalorder %s198, 0
      %s201 = sadd.s32 %s200, 1
      %s202 = scalar_select %p199, %s200, %s201
      %p205 = pneg %p199
      %p206 = scmp.eq.s32.totalorder %s22, 3
      %p207 = por %p205, %p206
      %p208 = scmp.ne.s32.totalorder %s200, %s203
      %p209 = scmp.eq.s32.totalorder %s22, 0
      %p210 = por %p208, %p209
      %p211 = scmp.ne.s32.totalorder %s200, %s203
      %p212 = scmp.eq.s32.totalorder %s27, 3
      %p213 = por %p211, %p212
      %p214 = scmp.ne.s32.totalorder %s203, %s204
      %p215 = scmp.eq.s32.totalorder %s27, 0
      %p216 = por %p214, %p215
      %p217 = scmp.ne.s32.totalorder %s203, %s204
      %p218 = scmp.eq.s32.totalorder %s28, 3
      %p219 = por %p217, %p218
      %p221 = scmp.ne.s32.totalorder %s204, %s220
      %p222 = scmp.eq.s32.totalorder %s28, 0
      %p223 = por %p221, %p222
      %s224 = ssub.s32 %s30, %s37
      %p225 = scmp.eq.s32.totalorder %s224, 0
      %s227 = sadd.s32 %s226, 1
      %s228 = scalar_select %p225, %s226, %s227
      %p231 = pneg %p225
      %p232 = scmp.eq.s32.totalorder %s22, 3
      %p233 = por %p231, %p232
      %p234 = scmp.ne.s32.totalorder %s226, %s229
      %p235 = scmp.eq.s32.totalorder %s22, 0
      %p236 = por %p234, %p235
      %p237 = scmp.ne.s32.totalorder %s226, %s229
      %p238 = scmp.eq.s32.totalorder %s27, 3
      %p239 = por %p237, %p238
      %p240 = scmp.ne.s32.totalorder %s229, %s230
      %p241 = scmp.eq.s32.totalorder %s27, 0
      %p242 = por %p240, %p241
      %p243 = scmp.ne.s32.totalorder %s229, %s230
      %p244 = scmp.eq.s32.totalorder %s28, 3
      %p245 = por %p243, %p244
      %p247 = scmp.ne.s32.totalorder %s230, %s246
      %p248 = scmp.eq.s32.totalorder %s28, 0
      %p249 = por %p247, %p248
      %s250 = ssub.s32 %s30, %s37
      %p251 = scmp.eq.s32.totalorder %s250, 0
      %s253 = sadd.s32 %s252, 1
      %s254 = scalar_select %p251, %s252, %s253
      %p257 = pneg %p251
      %p258 = scmp.eq.s32.totalorder %s22, 3
      %p259 = por %p257, %p258
      %p260 = scmp.ne.s32.totalorder %s252, %s255
      %p261 = scmp.eq.s32.totalorder %s22, 0
      %p262 = por %p260, %p261
      %p263 = scmp.ne.s32.totalorder %s252, %s255
      %p264 = scmp.eq.s32.totalorder %s27, 3
      %p265 = por %p263, %p264
      %p266 = scmp.ne.s32.totalorder %s255, %s256
      %p267 = scmp.eq.s32.totalorder %s27, 0
      %p268 = por %p266, %p267
      %p269 = scmp.ne.s32.totalorder %s255, %s256
      %p270 = scmp.eq.s32.totalorder %s28, 3
      %p271 = por %p269, %p270
      %p273 = scmp.ne.s32.totalorder %s256, %s272
      %p274 = scmp.eq.s32.totalorder %s28, 0
      %p275 = por %p273, %p274
      %s276 = ssub.s32 %s30, %s37
      %p277 = scmp.eq.s32.totalorder %s276, 0
      %s279 = sadd.s32 %s278, 1
      %s280 = scalar_select %p277, %s278, %s279
      %p283 = pneg %p277
      %p284 = scmp.eq.s32.totalorder %s22, 3
      %p285 = por %p283, %p284
      %p286 = scmp.ne.s32.totalorder %s278, %s281
      %p287 = scmp.eq.s32.totalorder %s22, 0
      %p288 = por %p286, %p287
      %p289 = scmp.ne.s32.totalorder %s278, %s281
      %p290 = scmp.eq.s32.totalorder %s27, 3
      %p291 = por %p289, %p290
      %p292 = scmp.ne.s32.totalorder %s281, %s282
      %p293 = scmp.eq.s32.totalorder %s27, 0
      %p294 = por %p292, %p293
      %p295 = scmp.ne.s32.totalorder %s281, %s282
      %p296 = scmp.eq.s32.totalorder %s28, 3
      %p297 = por %p295, %p296
      %p299 = scmp.ne.s32.totalorder %s282, %s298
      %p300 = scmp.eq.s32.totalorder %s28, 0
      %p301 = por %p299, %p300
      %s302 = ssub.s32 %s30, %s37
      %p303 = scmp.eq.s32.totalorder %s302, 0
      %s305 = sadd.s32 %s304, 1
      %s306 = scalar_select %p303, %s304, %s305
      %p309 = pneg %p303
      %p310 = scmp.eq.s32.totalorder %s22, 3
      %p311 = por %p309, %p310
      %p312 = scmp.ne.s32.totalorder %s304, %s307
      %p313 = scmp.eq.s32.totalorder %s22, 0
      %p314 = por %p312, %p313
      %p315 = scmp.ne.s32.totalorder %s304, %s307
      %p316 = scmp.eq.s32.totalorder %s27, 3
      %p317 = por %p315, %p316
      %p318 = scmp.ne.s32.totalorder %s307, %s308
      %p319 = scmp.eq.s32.totalorder %s27, 0
      %p320 = por %p318, %p319
      %p321 = scmp.ne.s32.totalorder %s307, %s308
      %p322 = scmp.eq.s32.totalorder %s28, 3
      %p323 = por %p321, %p322
      %p325 = scmp.ne.s32.totalorder %s308, %s324
      %p326 = scmp.eq.s32.totalorder %s28, 0
      %p327 = por %p325, %p326
      %s328 = ssub.s32 %s30, %s37
      %p329 = scmp.eq.s32.totalorder %s328, 0
      %s331 = sadd.s32 %s330, 1
      %s332 = scalar_select %p329, %s330, %s331
      %p335 = pneg %p329
      %p336 = scmp.eq.s32.totalorder %s22, 3
      %p337 = por %p335, %p336
      %p338 = scmp.ne.s32.totalorder %s330, %s333
      %p339 = scmp.eq.s32.totalorder %s22, 0
      %p340 = por %p338, %p339
      %p341 = scmp.ne.s32.totalorder %s330, %s333
      %p342 = scmp.eq.s32.totalorder %s27, 3
      %p343 = por %p341, %p342
      %p344 = scmp.ne.s32.totalorder %s333, %s334
      %p345 = scmp.eq.s32.totalorder %s27, 0
      %p346 = por %p344, %p345
      %p347 = scmp.ne.s32.totalorder %s333, %s334
      %p348 = scmp.eq.s32.totalorder %s28, 3
      %p349 = por %p347, %p348
      %p351 = scmp.ne.s32.totalorder %s334, %s350
      %p352 = scmp.eq.s32.totalorder %s28, 0
      %p353 = por %p351, %p352
      %s354 = ssub.s32 %s30, %s37
      %p355 = scmp.eq.s32.totalorder %s354, 0
      %s357 = sadd.s32 %s356, 1
      %s358 = scalar_select %p355, %s356, %s357
      %p361 = pneg %p355
      %p362 = scmp.eq.s32.totalorder %s22, 3
      %p363 = por %p361, %p362
      %p364 = scmp.ne.s32.totalorder %s356, %s359
      %p365 = scmp.eq.s32.totalorder %s22, 0
      %p366 = por %p364, %p365
      %p367 = scmp.ne.s32.totalorder %s356, %s359
      %p368 = scmp.eq.s32.totalorder %s27, 3
      %p369 = por %p367, %p368
      %p370 = scmp.ne.s32.totalorder %s359, %s360
      %p371 = scmp.eq.s32.totalorder %s27, 0
      %p372 = por %p370, %p371
      %p373 = scmp.ne.s32.totalorder %s359, %s360
      %p374 = scmp.eq.s32.totalorder %s28, 3
      %p375 = por %p373, %p374
      %p377 = scmp.ne.s32.totalorder %s360, %s376
      %p378 = scmp.eq.s32.totalorder %s28, 0
      %p379 = por %p377, %p378
      %s380 = ssub.s32 %s29, %s41
      %p381 = scmp.eq.s32.totalorder %s380, 0
      %s383 = sadd.s32 %s382, 1
      %s384 = scalar_select %p381, %s382, %s383
      %p387 = pneg %p381
      %p388 = scmp.eq.s32.totalorder %s22, 3
      %p389 = por %p387, %p388
      %p390 = scmp.ne.s32.totalorder %s382, %s385
      %p391 = scmp.eq.s32.totalorder %s22, 0
      %p392 = por %p390, %p391
      %p393 = scmp.ne.s32.totalorder %s382, %s385
      %p394 = scmp.eq.s32.totalorder %s27, 3
      %p395 = por %p393, %p394
      %p396 = scmp.ne.s32.totalorder %s385, %s386
      %p397 = scmp.eq.s32.totalorder %s27, 0
      %p398 = por %p396, %p397
      %p399 = scmp.ne.s32.totalorder %s385, %s386
      %p400 = scmp.eq.s32.totalorder %s28, 3
      %p401 = por %p399, %p400
      %p403 = scmp.ne.s32.totalorder %s386, %s402
      %p404 = scmp.eq.s32.totalorder %s28, 0
      %p405 = por %p403, %p404
      %p406 = scmp.le.s32.totalorder 1, %s22
      %p407 = scmp.lt.s32.totalorder %s22, 5
      %p408 = pnand %p406, %p407
      %p409 = pneg %p408
      // Predicated region
      $region9: #{tpu_custom_call.1} parent=5 // pred_check
        _
      $region10: #{tpu_custom_call.1} parent=5 // pred_check_branch
        %411 = sbr.rel (%p408) target = $region12
      $region11: #{tpu_custom_call.1} parent=5 // pred_region
        %s412 = ssub.s32 %s22, 1
      $region12: #{tpu_custom_call.1} parent=5 // pred_fallthru
        _
      %p413 = scmp.lt.s32.totalorder %s22, 4
      // Predicated region
      $region13: #{tpu_custom_call.1} parent=5 // pred_check
        %p414 = pneg %p413
      $region14: #{tpu_custom_call.1} parent=5 // pred_check_branch
        %416 = sbr.rel (%p414) target = $region16
      $region15: #{tpu_custom_call.1} parent=5 // pred_region
        // Predicated region
        $region17: #{tpu_custom_call.1} parent=15 // pred_check
          %p417 = pneg %p54
        $region18: #{tpu_custom_call.1} parent=15 // pred_check_branch
          %419 = sbr.rel (%p417) target = $region20
        $region19: #{tpu_custom_call.1} parent=15 // pred_region
          %p420 = scmp.lt.s32.totalorder %s29, 1
          %s421 = scalar_select %p420, %s29, 1
          %s422 = smul.addr %s421, 8
          %s423 = scalar_lea.vmem %s0, %s422
        $region20: #{tpu_custom_call.1} parent=15 // pred_fallthru
          _
        // Predicated region
        $region21: #{tpu_custom_call.1} parent=15 // pred_check
          %p424 = pneg %p80
        $region22: #{tpu_custom_call.1} parent=15 // pred_check_branch
          %426 = sbr.rel (%p424) target = $region24
        $region23: #{tpu_custom_call.1} parent=15 // pred_region
          %p427 = scmp.lt.s32.totalorder %s30, 1
          %s428 = scalar_select %p427, %s30, 1
          %s429 = smul.addr %s428, 4
          %s430 = smul.addr %s429, 8
          %s431 = scalar_lea.vmem %s1, %s430
        $region24: #{tpu_custom_call.1} parent=15 // pred_fallthru
          _
        // Predicated region
        $region25: #{tpu_custom_call.1} parent=15 // pred_check
          %p432 = pneg %p106
        $region26: #{tpu_custom_call.1} parent=15 // pred_check_branch
          %434 = sbr.rel (%p432) target = $region28
        $region27: #{tpu_custom_call.1} parent=15 // pred_region
          %p435 = scmp.lt.s32.totalorder %s30, 1
          %s436 = scalar_select %p435, %s30, 1
          %s437 = scalar_lea.vmem %s2, %s436
        $region28: #{tpu_custom_call.1} parent=15 // pred_fallthru
          _
        // Predicated region
        $region29: #{tpu_custom_call.1} parent=15 // pred_check
          %p438 = pneg %p132
        $region30: #{tpu_custom_call.1} parent=15 // pred_check_branch
          %440 = sbr.rel (%p438) target = $region32
        $region31: #{tpu_custom_call.1} parent=15 // pred_region
          %p441 = scmp.lt.s32.totalorder %s30, 1
          %s442 = scalar_select %p441, %s30, 1
          %s443 = smul.addr %s442, 4
          %s444 = smul.addr %s443, 8
          %s445 = scalar_lea.vmem %s3, %s444
        $region32: #{tpu_custom_call.1} parent=15 // pred_fallthru
          _
        // Predicated region
        $region33: #{tpu_custom_call.1} parent=15 // pred_check
          %p446 = pneg %p158
        $region34: #{tpu_custom_call.1} parent=15 // pred_check_branch
          %448 = sbr.rel (%p446) target = $region36
        $region35: #{tpu_custom_call.1} parent=15 // pred_region
          %p449 = scmp.lt.s32.totalorder %s30, 1
          %s450 = scalar_select %p449, %s30, 1
          %s451 = scalar_lea.vmem %s4, %s450
        $region36: #{tpu_custom_call.1} parent=15 // pred_fallthru
          _
        // Predicated region
        $region37: #{tpu_custom_call.1} parent=15 // pred_check
          %p452 = pneg %p184
        $region38: #{tpu_custom_call.1} parent=15 // pred_check_branch
          %454 = sbr.rel (%p452) target = $region40
        $region39: #{tpu_custom_call.1} parent=15 // pred_region
          %p455 = scmp.lt.s32.totalorder %s30, 1
          %s456 = scalar_select %p455, %s30, 1
          %s457 = scalar_lea.vmem %s5, %s456
        $region40: #{tpu_custom_call.1} parent=15 // pred_fallthru
          _
        // Predicated region
        $region41: #{tpu_custom_call.1} parent=15 // pred_check
          %p458 = pneg %p210
        $region42: #{tpu_custom_call.1} parent=15 // pred_check_branch
          %460 = sbr.rel (%p458) target = $region44
        $region43: #{tpu_custom_call.1} parent=15 // pred_region
          %p461 = scmp.lt.s32.totalorder %s30, 1
          %s462 = scalar_select %p461, %s30, 1
          %s463 = scalar_lea.vmem %s6, %s462
        $region44: #{tpu_custom_call.1} parent=15 // pred_fallthru
          _
        // Predicated region
        $region45: #{tpu_custom_call.1} parent=15 // pred_check
          %p464 = pneg %p236
        $region46: #{tpu_custom_call.1} parent=15 // pred_check_branch
          %466 = sbr.rel (%p464) target = $region48
        $region47: #{tpu_custom_call.1} parent=15 // pred_region
          %p467 = scmp.lt.s32.totalorder %s30, 1
          %s468 = scalar_select %p467, %s30, 1
          %s469 = smul.addr %s468, 4
          %s470 = smul.addr %s469, 8
          %s471 = scalar_lea.vmem %s7, %s470
        $region48: #{tpu_custom_call.1} parent=15 // pred_fallthru
          _
        // Predicated region
        $region49: #{tpu_custom_call.1} parent=15 // pred_check
          %p472 = pneg %p262
        $region50: #{tpu_custom_call.1} parent=15 // pred_check_branch
          %474 = sbr.rel (%p472) target = $region52
        $region51: #{tpu_custom_call.1} parent=15 // pred_region
          %p475 = scmp.lt.s32.totalorder %s30, 1
          %s476 = scalar_select %p475, %s30, 1
          %s477 = scalar_lea.vmem %s8, %s476
        $region52: #{tpu_custom_call.1} parent=15 // pred_fallthru
          _
        // Predicated region
        $region53: #{tpu_custom_call.1} parent=15 // pred_check
          %p478 = pneg %p288
        $region54: #{tpu_custom_call.1} parent=15 // pred_check_branch
          %480 = sbr.rel (%p478) target = $region56
        $region55: #{tpu_custom_call.1} parent=15 // pred_region
          %p481 = scmp.lt.s32.totalorder %s30, 1
          %s482 = scalar_select %p481, %s30, 1
          %s483 = smul.addr %s482, 16
          %s484 = smul.addr %s483, 8
          %s485 = scalar_lea.vmem %s9, %s484
        $region56: #{tpu_custom_call.1} parent=15 // pred_fallthru
          _
        // Predicated region
        $region57: #{tpu_custom_call.1} parent=15 // pred_check
          %p486 = pneg %p314
        $region58: #{tpu_custom_call.1} parent=15 // pred_check_branch
          %488 = sbr.rel (%p486) target = $region60
        $region59: #{tpu_custom_call.1} parent=15 // pred_region
          %p489 = scmp.lt.s32.totalorder %s30, 1
          %s490 = scalar_select %p489, %s30, 1
          %s491 = scalar_lea.vmem %s10, %s490
        $region60: #{tpu_custom_call.1} parent=15 // pred_fallthru
          _
        // Predicated region
        $region61: #{tpu_custom_call.1} parent=15 // pred_check
          %p492 = pneg %p340
        $region62: #{tpu_custom_call.1} parent=15 // pred_check_branch
          %494 = sbr.rel (%p492) target = $region64
        $region63: #{tpu_custom_call.1} parent=15 // pred_region
          %p495 = scmp.lt.s32.totalorder %s30, 1
          %s496 = scalar_select %p495, %s30, 1
          %s497 = scalar_lea.vmem %s11, %s496
        $region64: #{tpu_custom_call.1} parent=15 // pred_fallthru
          _
        // Predicated region
        $region65: #{tpu_custom_call.1} parent=15 // pred_check
          %p498 = pneg %p366
        $region66: #{tpu_custom_call.1} parent=15 // pred_check_branch
          %500 = sbr.rel (%p498) target = $region68
        $region67: #{tpu_custom_call.1} parent=15 // pred_region
          %p501 = scmp.lt.s32.totalorder %s30, 1
          %s502 = scalar_select %p501, %s30, 1
          %s503 = scalar_lea.vmem %s12, %s502
        $region68: #{tpu_custom_call.1} parent=15 // pred_fallthru
          _
      $region16: #{tpu_custom_call.1} parent=5 // pred_fallthru
        _
      %p504 = scmp.le.s32.totalorder 1, %s22
      %p505 = scmp.lt.s32.totalorder %s22, 5
      %p506 = pnand %p504, %p505
      %p507 = pneg %p506
      // Predicated region
      $region69: #{tpu_custom_call.1} parent=5 // pred_check
        _
      $region70: #{tpu_custom_call.1} parent=5 // pred_check_branch
        %509 = sbr.rel (%p506) target = $region72
      $region71: #{tpu_custom_call.1} parent=5 // pred_region
        %s510 = ssub.s32 %s22, 1
        %p511 = scmp.lt.s32.totalorder %s31, 1
        %s512 = scalar_select %p511, %s31, 1
        %s513 = smul.addr %s512, 8
        %s514 = scalar_lea.vmem %s0, %s513
        %p515 = pneg %p60
        %p516 = pneg %p57
        %p517 = scmp.lt.s32.totalorder %s32, 1
        %s518 = scalar_select %p517, %s32, 1
        %s519 = smul.addr %s518, 4
        %s520 = smul.addr %s519, 8
        %s521 = scalar_lea.vmem %s1, %s520
        %p522 = pneg %p86
        %p523 = pneg %p83
        %p524 = scmp.lt.s32.totalorder %s32, 1
        %s525 = scalar_select %p524, %s32, 1
        %s526 = scalar_lea.vmem %s2, %s525
        %p527 = pneg %p112
        %p528 = pneg %p109
        %p529 = scmp.lt.s32.totalorder %s32, 1
        %s530 = scalar_select %p529, %s32, 1
        %s531 = smul.addr %s530, 4
        %s532 = smul.addr %s531, 8
        %s533 = scalar_lea.vmem %s3, %s532
        %p534 = pneg %p138
        %p535 = pneg %p135
        %p536 = scmp.lt.s32.totalorder %s32, 1
        %s537 = scalar_select %p536, %s32, 1
        %s538 = scalar_lea.vmem %s4, %s537
        %p539 = pneg %p164
        %p540 = pneg %p161
        %p541 = scmp.lt.s32.totalorder %s32, 1
        %s542 = scalar_select %p541, %s32, 1
        %s543 = scalar_lea.vmem %s5, %s542
        %p544 = pneg %p190
        %p545 = pneg %p187
        %p546 = scmp.lt.s32.totalorder %s32, 1
        %s547 = scalar_select %p546, %s32, 1
        %s548 = scalar_lea.vmem %s6, %s547
        %p549 = pneg %p216
        %p550 = pneg %p213
        %p551 = scmp.lt.s32.totalorder %s32, 1
        %s552 = scalar_select %p551, %s32, 1
        %s553 = smul.addr %s552, 4
        %s554 = smul.addr %s553, 8
        %s555 = scalar_lea.vmem %s7, %s554
        %p556 = pneg %p242
        %p557 = pneg %p239
        %p558 = scmp.lt.s32.totalorder %s32, 1
        %s559 = scalar_select %p558, %s32, 1
        %s560 = scalar_lea.vmem %s8, %s559
        %p561 = pneg %p268
        %p562 = pneg %p265
        %p563 = scmp.lt.s32.totalorder %s32, 1
        %s564 = scalar_select %p563, %s32, 1
        %s565 = smul.addr %s564, 16
        %s566 = smul.addr %s565, 8
        %s567 = scalar_lea.vmem %s9, %s566
        %p568 = pneg %p294
        %p569 = pneg %p291
        %p570 = scmp.lt.s32.totalorder %s32, 1
        %s571 = scalar_select %p570, %s32, 1
        %s572 = scalar_lea.vmem %s10, %s571
        %p573 = pneg %p320
        %p574 = pneg %p317
        %p575 = scmp.lt.s32.totalorder %s32, 1
        %s576 = scalar_select %p575, %s32, 1
        %s577 = scalar_lea.vmem %s11, %s576
        %p578 = pneg %p346
        %p579 = pneg %p343
        %p580 = scmp.lt.s32.totalorder %s32, 1
        %s581 = scalar_select %p580, %s32, 1
        %s582 = scalar_lea.vmem %s12, %s581
        %p583 = pneg %p372
        %p584 = pneg %p369
        %p585 = pneg %p398
        %p586 = pneg %p395
        %s587 = sand.u32 %s385, 1
        %s588 = scalar_lea.sflag [#allocation4], %s587
        %s589 = sand.u32 %s385, 1
        %s590 = scalar_lea.vmem [#allocation3], %s589
        %p591 = scmp.lt.s32.totalorder %s31, 1
        %s592 = scalar_select %p591, %s31, 1
        %s593 = smul.addr %s592, 8
        %s594 = scalar_lea.vmem %s0, %s593
        %p595 = scmp.lt.s32.totalorder %s32, 1
        %s596 = scalar_select %p595, %s32, 1
        %s597 = smul.addr %s596, 4
        %s598 = smul.addr %s597, 8
        %s599 = scalar_lea.vmem %s1, %s598
        %p600 = scmp.lt.s32.totalorder %s32, 1
        %s601 = scalar_select %p600, %s32, 1
        %s602 = scalar_lea.vmem %s2, %s601
        %p603 = scmp.lt.s32.totalorder %s32, 1
        %s604 = scalar_select %p603, %s32, 1
        %s605 = smul.addr %s604, 4
        %s606 = smul.addr %s605, 8
        %s607 = scalar_lea.vmem %s3, %s606
        %p608 = scmp.lt.s32.totalorder %s32, 1
        %s609 = scalar_select %p608, %s32, 1
        %s610 = scalar_lea.vmem %s4, %s609
        %p611 = scmp.lt.s32.totalorder %s32, 1
        %s612 = scalar_select %p611, %s32, 1
        %s613 = scalar_lea.vmem %s5, %s612
        %p614 = scmp.lt.s32.totalorder %s32, 1
        %s615 = scalar_select %p614, %s32, 1
        %s616 = scalar_lea.vmem %s6, %s615
        %p617 = scmp.lt.s32.totalorder %s32, 1
        %s618 = scalar_select %p617, %s32, 1
        %s619 = smul.addr %s618, 4
        %s620 = smul.addr %s619, 8
        %s621 = scalar_lea.vmem %s7, %s620
        %p622 = scmp.lt.s32.totalorder %s32, 1
        %s623 = scalar_select %p622, %s32, 1
        %s624 = scalar_lea.vmem %s8, %s623
        %p625 = scmp.lt.s32.totalorder %s32, 1
        %s626 = scalar_select %p625, %s32, 1
        %s627 = smul.addr %s626, 16
        %s628 = smul.addr %s627, 8
        %s629 = scalar_lea.vmem %s9, %s628
        %p630 = scmp.lt.s32.totalorder %s32, 1
        %s631 = scalar_select %p630, %s32, 1
        %s632 = scalar_lea.vmem %s10, %s631
        %p633 = scmp.lt.s32.totalorder %s32, 1
        %s634 = scalar_select %p633, %s32, 1
        %s635 = scalar_lea.vmem %s11, %s634
        %p636 = scmp.lt.s32.totalorder %s32, 1
        %s637 = scalar_select %p636, %s32, 1
        %s638 = scalar_lea.vmem %s12, %s637
        %p639 = scmp.eq.s32.totalorder %s32, 0
        // Predicated region
        $region73: #{tpu_custom_call.1} parent=71 // pred_check
          %p640 = pneg %p639
        $region74: #{tpu_custom_call.1} parent=71 // pred_check_branch
          %642 = sbr.rel (%p640) target = $region76
        $region75: #{tpu_custom_call.1} parent=71 // pred_region
          %v643 = vld [vmem:[%s594] sm:$0xff]
          %vm644 = vcmask 261120
          %645 = vst.msk [vmem:[#allocation2] sm:$0xff] %vm644, %v643
        $region76: #{tpu_custom_call.1} parent=71 // pred_fallthru
          _
        %v646 = vld [vmem:[#allocation2] sm:$0xff]
        %v647 = vld [vmem:[%s599] sm:$0xff]
        %v648 = vld [vmem:[%s599 + $0x8] sm:$0xff]
        %v649 = vld [vmem:[%s599 + $0x10] sm:$0xff]
        %v650 = vld [vmem:[%s599 + $0x18] sm:$0xff]
        %v651 = vld [vmem:[%s602] sm:$0x1]
        %v653 = vlaneseq
        %v654 = vshrl.u32 %v653, 7
        %v655 = vsub.s32 0, %v654
        %v656 = vrot.slane %v651, %v655
        %vm658 = vcmask 261120
        %v660 = vsel %vm658, %v646, 0
        %662 = vmatprep.subr.mxu0 0.0
        %663 = vmatpush1.msra.mxu0 %v647
        %664 = vmatprep.subr.mxu0 0.0
        %665 = vmatpush1.msra.mxu0 %v648
        %666 = vmatprep.subr.mxu0 0.0
        %667 = vmatpush1.msra.mxu0 %v649
        %668 = vmatprep.subr.mxu0 0.0
        %669 = vmatpush1.msra.mxu0 %v650
        %670 = vmatprep.subr.mxu0 0.0
        %671 = vmatpush1.msra.mxu0 0.0
        %672 = vmatprep.subr.mxu0 0.0
        %673 = vmatpush1.msra.mxu0 0.0
        %674 = vmatprep.subr.mxu0 0.0
        %675 = vmatpush1.msra.mxu0 0.0
        %676 = vmatprep.subr.mxu0 0.0
        %677 = vmatpush1.msra.mxu0 0.0
        %678 = vmatprep.subr.mxu0 0.0
        %679 = vmatpush1.msra.mxu0 0.0
        %680 = vmatprep.subr.mxu0 0.0
        %681 = vmatpush1.msra.mxu0 0.0
        %682 = vmatprep.subr.mxu0 0.0
        %683 = vmatpush1.msra.mxu0 0.0
        %684 = vmatprep.subr.mxu0 0.0
        %685 = vmatpush1.msra.mxu0 0.0
        %686 = vmatprep.subr.mxu0 0.0
        %687 = vmatpush1.msra.mxu0 0.0
        %688 = vmatprep.subr.mxu0 0.0
        %689 = vmatpush1.msra.mxu0 0.0
        %690 = vmatprep.subr.mxu0 0.0
        %691 = vmatpush1.msra.mxu0 0.0
        %692 = vmatprep.subr.mxu0 0.0
        %693 = vmatpush1.msra.mxu0 0.0
        %694 = vmatprep.subr.mxu0 0.0
        %695 = vmatpush1.msra.mxu0 0.0
        %696 = vmatprep.subr.mxu0 0.0
        %697 = vmatpush1.msra.mxu0 0.0
        %698 = vmatprep.subr.mxu0 0.0
        %699 = vmatpush1.msra.mxu0 0.0
        %700 = vmatprep.subr.mxu0 0.0
        %701 = vmatpush1.msra.mxu0 0.0
        %702 = vmatprep.subr.mxu0 0.0
        %703 = vmatpush1.msra.mxu0 0.0
        %704 = vmatprep.subr.mxu0 0.0
        %705 = vmatpush1.msra.mxu0 0.0
        %706 = vmatprep.subr.mxu0 0.0
        %707 = vmatpush1.msra.mxu0 0.0
        %708 = vmatprep.subr.mxu0 0.0
        %709 = vmatpush1.msra.mxu0 0.0
        %710 = vmatprep.subr.mxu0 0.0
        %711 = vmatpush1.msra.mxu0 0.0
        %712 = vmatprep.subr.mxu0 0.0
        %713 = vmatpush1.msra.mxu0 0.0
        %714 = vmatprep.subr.mxu0 0.0
        %715 = vmatpush1.msra.mxu0 0.0
        %716 = vmatprep.subr.mxu0 0.0
        %717 = vmatpush1.msra.mxu0 0.0
        %718 = vmatprep.subr.mxu0 0.0
        %719 = vmatpush1.msra.mxu0 0.0
        %720 = vmatprep.subr.mxu0 0.0
        %721 = vmatpush1.msra.mxu0 0.0
        %722 = vmatprep.subr.mxu0 0.0
        %723 = vmatpush1.msra.mxu0 0.0
        %724 = vmatprep.subr.mxu0 0.0
        %725 = vmatpush1.msra.mxu0 0.0
        %726 = vmatprep.mubr.f32.mxu0 0.0
        %727 = vmatmul.mubr.f32.gmra.mrb[0].mxu0 %v660
        %v728 = vpop.f32.mrb[0].mxu0
        %v729 = vadd.f32 %v656, %v728
        %v730 = vpop.f32.mrb[0].mxu0
        %731 = vdwg.mxu0
        %733 = vrot.lane.b32.xlu0 %v729, 96
        %v734 = vpop.permute.xlu0 %733
        %vm735 = vcmask 64512
        %v736 = vsel %vm735, %v729, 0
        %v738 = vsel %vm735, %v734, 0
        %740 = vmatprep.subr.mxu0 0.0
        %741 = vmatpush1.xpose.msra.mxu0 %v738
        %742 = vmatprep.subr.mxu0 0.0
        %743 = vmatpush1.xpose.msra.mxu0 0.0
        %744 = vmatprep.subr.mxu0 0.0
        %745 = vmatpush1.xpose.msra.mxu0 0.0
        %746 = vmatprep.subr.mxu0 0.0
        %747 = vmatpush1.xpose.msra.mxu0 0.0
        %748 = vmatprep.subr.mxu0 0.0
        %749 = vmatpush1.xpose.msra.mxu0 0.0
        %750 = vmatprep.subr.mxu0 0.0
        %751 = vmatpush1.xpose.msra.mxu0 0.0
        %752 = vmatprep.subr.mxu0 0.0
        %753 = vmatpush1.xpose.msra.mxu0 0.0
        %754 = vmatprep.subr.mxu0 0.0
        %755 = vmatpush1.xpose.msra.mxu0 0.0
        %756 = vmatprep.subr.mxu0 0.0
        %757 = vmatpush1.xpose.msra.mxu0 0.0
        %758 = vmatprep.subr.mxu0 0.0
        %759 = vmatpush1.xpose.msra.mxu0 0.0
        %760 = vmatprep.subr.mxu0 0.0
        %761 = vmatpush1.xpose.msra.mxu0 0.0
        %762 = vmatprep.subr.mxu0 0.0
        %763 = vmatpush1.xpose.msra.mxu0 0.0
        %764 = vmatprep.subr.mxu0 0.0
        %765 = vmatpush1.xpose.msra.mxu0 0.0
        %766 = vmatprep.subr.mxu0 0.0
        %767 = vmatpush1.xpose.msra.mxu0 0.0
        %768 = vmatprep.subr.mxu0 0.0
        %769 = vmatpush1.xpose.msra.mxu0 0.0
        %770 = vmatprep.subr.mxu0 0.0
        %771 = vmatpush1.xpose.msra.mxu0 0.0
        %772 = vmatprep.subr.mxu0 0.0
        %773 = vmatpush1.xpose.msra.mxu0 0.0
        %774 = vmatprep.subr.mxu0 0.0
        %775 = vmatpush1.xpose.msra.mxu0 0.0
        %776 = vmatprep.subr.mxu0 0.0
        %777 = vmatpush1.xpose.msra.mxu0 0.0
        %778 = vmatprep.subr.mxu0 0.0
        %779 = vmatpush1.xpose.msra.mxu0 0.0
        %780 = vmatprep.subr.mxu0 0.0
        %781 = vmatpush1.xpose.msra.mxu0 0.0
        %782 = vmatprep.subr.mxu0 0.0
        %783 = vmatpush1.xpose.msra.mxu0 0.0
        %784 = vmatprep.subr.mxu0 0.0
        %785 = vmatpush1.xpose.msra.mxu0 0.0
        %786 = vmatprep.subr.mxu0 0.0
        %787 = vmatpush1.xpose.msra.mxu0 0.0
        %788 = vmatprep.subr.mxu0 0.0
        %789 = vmatpush1.xpose.msra.mxu0 0.0
        %790 = vmatprep.subr.mxu0 0.0
        %791 = vmatpush1.xpose.msra.mxu0 0.0
        %792 = vmatprep.subr.mxu0 0.0
        %793 = vmatpush1.xpose.msra.mxu0 0.0
        %794 = vmatprep.subr.mxu0 0.0
        %795 = vmatpush1.xpose.msra.mxu0 0.0
        %796 = vmatprep.subr.mxu0 0.0
        %797 = vmatpush1.xpose.msra.mxu0 0.0
        %798 = vmatprep.subr.mxu0 0.0
        %799 = vmatpush1.xpose.msra.mxu0 0.0
        %800 = vmatprep.subr.mxu0 0.0
        %801 = vmatpush1.xpose.msra.mxu0 0.0
        %802 = vmatprep.subr.mxu0 0.0
        %803 = vmatpush1.xpose.msra.mxu0 0.0
        %804 = vmatprep.mubr.f32.mxu0 0.0
        %805 = vmatmul.mubr.f32.gmra.mrb[0].mxu0 %v736
        %v806 = vpop.f32.mrb[0].mxu0
        %v807 = vadd.f32 0.0, %v806
        %v808 = vpop.f32.mrb[0].mxu0
        %809 = vdwg.mxu0
        %v810 = vsel %vm735, %v807, -inf
        %811 = vmax.xlane.f32.xlu0 %v810
        %v812 = vpop.xlane.xlu0 %811
        %v813 = vsub.f32 %v807, %v812
        %v814 = vmul.f32 %v813, 1.442695
        %v815 = vpow.pop %v814
        %v816 = vsel %vm735, %v815, 0.0
        %817 = vadd.xlane.f32.xlu0 %v816
        %v818 = vpop.xlane.xlu0 %817
        %v819 = vrcp.pop %v818
        %v820 = vmul.f32 %v815, %v819
        %821 = vrot.lane.b32.xlu0 %v729, 64
        %v822 = vpop.permute.xlu0 %821
        %v825 = vsel %vm735, %v820, 0
        %827 = vmatprep.subr.mxu0 0.0
        %828 = vmatpush1.msra.mxu0 %v822
        %829 = vmatprep.subr.mxu0 0.0
        %830 = vmatpush1.msra.mxu0 0.0
        %831 = vmatprep.subr.mxu0 0.0
        %832 = vmatpush1.msra.mxu0 0.0
        %833 = vmatprep.subr.mxu0 0.0
        %834 = vmatpush1.msra.mxu0 0.0
        %835 = vmatprep.subr.mxu0 0.0
        %836 = vmatpush1.msra.mxu0 0.0
        %837 = vmatprep.subr.mxu0 0.0
        %838 = vmatpush1.msra.mxu0 0.0
        %839 = vmatprep.subr.mxu0 0.0
        %840 = vmatpush1.msra.mxu0 0.0
        %841 = vmatprep.subr.mxu0 0.0
        %842 = vmatpush1.msra.mxu0 0.0
        %843 = vmatprep.subr.mxu0 0.0
        %844 = vmatpush1.msra.mxu0 0.0
        %845 = vmatprep.subr.mxu0 0.0
        %846 = vmatpush1.msra.mxu0 0.0
        %847 = vmatprep.subr.mxu0 0.0
        %848 = vmatpush1.msra.mxu0 0.0
        %849 = vmatprep.subr.mxu0 0.0
        %850 = vmatpush1.msra.mxu0 0.0
        %851 = vmatprep.subr.mxu0 0.0
        %852 = vmatpush1.msra.mxu0 0.0
        %853 = vmatprep.subr.mxu0 0.0
        %854 = vmatpush1.msra.mxu0 0.0
        %855 = vmatprep.subr.mxu0 0.0
        %856 = vmatpush1.msra.mxu0 0.0
        %857 = vmatprep.subr.mxu0 0.0
        %858 = vmatpush1.msra.mxu0 0.0
        %859 = vmatprep.subr.mxu0 0.0
        %860 = vmatpush1.msra.mxu0 0.0
        %861 = vmatprep.subr.mxu0 0.0
        %862 = vmatpush1.msra.mxu0 0.0
        %863 = vmatprep.subr.mxu0 0.0
        %864 = vmatpush1.msra.mxu0 0.0
        %865 = vmatprep.subr.mxu0 0.0
        %866 = vmatpush1.msra.mxu0 0.0
        %867 = vmatprep.subr.mxu0 0.0
        %868 = vmatpush1.msra.mxu0 0.0
        %869 = vmatprep.subr.mxu0 0.0
        %870 = vmatpush1.msra.mxu0 0.0
        %871 = vmatprep.subr.mxu0 0.0
        %872 = vmatpush1.msra.mxu0 0.0
        %873 = vmatprep.subr.mxu0 0.0
        %874 = vmatpush1.msra.mxu0 0.0
        %875 = vmatprep.subr.mxu0 0.0
        %876 = vmatpush1.msra.mxu0 0.0
        %877 = vmatprep.subr.mxu0 0.0
        %878 = vmatpush1.msra.mxu0 0.0
        %879 = vmatprep.subr.mxu0 0.0
        %880 = vmatpush1.msra.mxu0 0.0
        %881 = vmatprep.subr.mxu0 0.0
        %882 = vmatpush1.msra.mxu0 0.0
        %883 = vmatprep.subr.mxu0 0.0
        %884 = vmatpush1.msra.mxu0 0.0
        %885 = vmatprep.subr.mxu0 0.0
        %886 = vmatpush1.msra.mxu0 0.0
        %887 = vmatprep.subr.mxu0 0.0
        %888 = vmatpush1.msra.mxu0 0.0
        %889 = vmatprep.subr.mxu0 0.0
        %890 = vmatpush1.msra.mxu0 0.0
        %891 = vmatprep.mubr.f32.mxu0 0.0
        %892 = vmatmul.mubr.f32.gmra.mrb[0].mxu0 %v825
        %v893 = vpop.f32.mrb[0].mxu0
        %v894 = vadd.f32 0.0, %v893
        %v895 = vpop.f32.mrb[0].mxu0
        %896 = vdwg.mxu0
        %v897 = vld [vmem:[%s607] sm:$0xff]
        %898 = vrot.lane.b32.xlu0 %v729, 120
        %v899 = vpop.permute.xlu0 %898
        %900 = vrot.lane.b32.xlu0 %v729, 88
        %v901 = vpop.permute.xlu0 %900
        %v902 = vsel %vm735, %v899, 0
        %v904 = vsel %vm735, %v901, 0
        %906 = vmatprep.subr.mxu0 0.0
        %907 = vmatpush1.xpose.msra.mxu0 %v904
        %908 = vmatprep.subr.mxu0 0.0
        %909 = vmatpush1.xpose.msra.mxu0 0.0
        %910 = vmatprep.subr.mxu0 0.0
        %911 = vmatpush1.xpose.msra.mxu0 0.0
        %912 = vmatprep.subr.mxu0 0.0
        %913 = vmatpush1.xpose.msra.mxu0 0.0
        %914 = vmatprep.subr.mxu0 0.0
        %915 = vmatpush1.xpose.msra.mxu0 0.0
        %916 = vmatprep.subr.mxu0 0.0
        %917 = vmatpush1.xpose.msra.mxu0 0.0
        %918 = vmatprep.subr.mxu0 0.0
        %919 = vmatpush1.xpose.msra.mxu0 0.0
        %920 = vmatprep.subr.mxu0 0.0
        %921 = vmatpush1.xpose.msra.mxu0 0.0
        %922 = vmatprep.subr.mxu0 0.0
        %923 = vmatpush1.xpose.msra.mxu0 0.0
        %924 = vmatprep.subr.mxu0 0.0
        %925 = vmatpush1.xpose.msra.mxu0 0.0
        %926 = vmatprep.subr.mxu0 0.0
        %927 = vmatpush1.xpose.msra.mxu0 0.0
        %928 = vmatprep.subr.mxu0 0.0
        %929 = vmatpush1.xpose.msra.mxu0 0.0
        %930 = vmatprep.subr.mxu0 0.0
        %931 = vmatpush1.xpose.msra.mxu0 0.0
        %932 = vmatprep.subr.mxu0 0.0
        %933 = vmatpush1.xpose.msra.mxu0 0.0
        %934 = vmatprep.subr.mxu0 0.0
        %935 = vmatpush1.xpose.msra.mxu0 0.0
        %936 = vmatprep.subr.mxu0 0.0
        %937 = vmatpush1.xpose.msra.mxu0 0.0
        %938 = vmatprep.subr.mxu0 0.0
        %939 = vmatpush1.xpose.msra.mxu0 0.0
        %940 = vmatprep.subr.mxu0 0.0
        %941 = vmatpush1.xpose.msra.mxu0 0.0
        %942 = vmatprep.subr.mxu0 0.0
        %943 = vmatpush1.xpose.msra.mxu0 0.0
        %944 = vmatprep.subr.mxu0 0.0
        %945 = vmatpush1.xpose.msra.mxu0 0.0
        %946 = vmatprep.subr.mxu0 0.0
        %947 = vmatpush1.xpose.msra.mxu0 0.0
        %948 = vmatprep.subr.mxu0 0.0
        %949 = vmatpush1.xpose.msra.mxu0 0.0
        %950 = vmatprep.subr.mxu0 0.0
        %951 = vmatpush1.xpose.msra.mxu0 0.0
        %952 = vmatprep.subr.mxu0 0.0
        %953 = vmatpush1.xpose.msra.mxu0 0.0
        %954 = vmatprep.subr.mxu0 0.0
        %955 = vmatpush1.xpose.msra.mxu0 0.0
        %956 = vmatprep.subr.mxu0 0.0
        %957 = vmatpush1.xpose.msra.mxu0 0.0
        %958 = vmatprep.subr.mxu0 0.0
        %959 = vmatpush1.xpose.msra.mxu0 0.0
        %960 = vmatprep.subr.mxu0 0.0
        %961 = vmatpush1.xpose.msra.mxu0 0.0
        %962 = vmatprep.subr.mxu0 0.0
        %963 = vmatpush1.xpose.msra.mxu0 0.0
        %964 = vmatprep.subr.mxu0 0.0
        %965 = vmatpush1.xpose.msra.mxu0 0.0
        %966 = vmatprep.subr.mxu0 0.0
        %967 = vmatpush1.xpose.msra.mxu0 0.0
        %968 = vmatprep.subr.mxu0 0.0
        %969 = vmatpush1.xpose.msra.mxu0 0.0
        %970 = vmatprep.mubr.f32.mxu0 0.0
        %971 = vmatmul.mubr.f32.gmra.mrb[0].mxu0 %v902
        %v972 = vpop.f32.mrb[0].mxu0
        %v973 = vadd.f32 0.0, %v972
        %v974 = vpop.f32.mrb[0].mxu0
        %975 = vdwg.mxu0
        %v976 = vsel %vm735, %v973, -inf
        %977 = vmax.xlane.f32.xlu0 %v976
        %v978 = vpop.xlane.xlu0 %977
        %v979 = vsub.f32 %v973, %v978
        %v980 = vmul.f32 %v979, 1.442695
        %v981 = vpow.pop %v980
        %v982 = vsel %vm735, %v981, 0.0
        %983 = vadd.xlane.f32.xlu0 %v982
        %v984 = vpop.xlane.xlu0 %983
        %v985 = vrcp.pop %v984
        %v986 = vmul.f32 %v981, %v985
        %987 = vrot.lane.b32.xlu0 %v729, 56
        %v988 = vpop.permute.xlu0 %987
        %v991 = vsel %vm735, %v986, 0
        %993 = vmatprep.subr.mxu0 0.0
        %994 = vmatpush1.msra.mxu0 %v988
        %995 = vmatprep.subr.mxu0 0.0
        %996 = vmatpush1.msra.mxu0 0.0
        %997 = vmatprep.subr.mxu0 0.0
        %998 = vmatpush1.msra.mxu0 0.0
        %999 = vmatprep.subr.mxu0 0.0
        %1000 = vmatpush1.msra.mxu0 0.0
        %1001 = vmatprep.subr.mxu0 0.0
        %1002 = vmatpush1.msra.mxu0 0.0
        %1003 = vmatprep.subr.mxu0 0.0
        %1004 = vmatpush1.msra.mxu0 0.0
        %1005 = vmatprep.subr.mxu0 0.0
        %1006 = vmatpush1.msra.mxu0 0.0
        %1007 = vmatprep.subr.mxu0 0.0
        %1008 = vmatpush1.msra.mxu0 0.0
        %1009 = vmatprep.subr.mxu0 0.0
        %1010 = vmatpush1.msra.mxu0 0.0
        %1011 = vmatprep.subr.mxu0 0.0
        %1012 = vmatpush1.msra.mxu0 0.0
        %1013 = vmatprep.subr.mxu0 0.0
        %1014 = vmatpush1.msra.mxu0 0.0
        %1015 = vmatprep.subr.mxu0 0.0
        %1016 = vmatpush1.msra.mxu0 0.0
        %1017 = vmatprep.subr.mxu0 0.0
        %1018 = vmatpush1.msra.mxu0 0.0
        %1019 = vmatprep.subr.mxu0 0.0
        %1020 = vmatpush1.msra.mxu0 0.0
        %1021 = vmatprep.subr.mxu0 0.0
        %1022 = vmatpush1.msra.mxu0 0.0
        %1023 = vmatprep.subr.mxu0 0.0
        %1024 = vmatpush1.msra.mxu0 0.0
        %1025 = vmatprep.subr.mxu0 0.0
        %1026 = vmatpush1.msra.mxu0 0.0
        %1027 = vmatprep.subr.mxu0 0.0
        %1028 = vmatpush1.msra.mxu0 0.0
        %1029 = vmatprep.subr.mxu0 0.0
        %1030 = vmatpush1.msra.mxu0 0.0
        %1031 = vmatprep.subr.mxu0 0.0
        %1032 = vmatpush1.msra.mxu0 0.0
        %1033 = vmatprep.subr.mxu0 0.0
        %1034 = vmatpush1.msra.mxu0 0.0
        %1035 = vmatprep.subr.mxu0 0.0
        %1036 = vmatpush1.msra.mxu0 0.0
        %1037 = vmatprep.subr.mxu0 0.0
        %1038 = vmatpush1.msra.mxu0 0.0
        %1039 = vmatprep.subr.mxu0 0.0
        %1040 = vmatpush1.msra.mxu0 0.0
        %1041 = vmatprep.subr.mxu0 0.0
        %1042 = vmatpush1.msra.mxu0 0.0
        %1043 = vmatprep.subr.mxu0 0.0
        %1044 = vmatpush1.msra.mxu0 0.0
        %1045 = vmatprep.subr.mxu0 0.0
        %1046 = vmatpush1.msra.mxu0 0.0
        %1047 = vmatprep.subr.mxu0 0.0
        %1048 = vmatpush1.msra.mxu0 0.0
        %1049 = vmatprep.subr.mxu0 0.0
        %1050 = vmatpush1.msra.mxu0 0.0
        %1051 = vmatprep.subr.mxu0 0.0
        %1052 = vmatpush1.msra.mxu0 0.0
        %1053 = vmatprep.subr.mxu0 0.0
        %1054 = vmatpush1.msra.mxu0 0.0
        %1055 = vmatprep.subr.mxu0 0.0
        %1056 = vmatpush1.msra.mxu0 0.0
        %1057 = vmatprep.mubr.f32.mxu0 0.0
        %1058 = vmatmul.mubr.f32.gmra.mrb[0].mxu0 %v991
        %v1059 = vpop.f32.mrb[0].mxu0
        %v1060 = vadd.f32 0.0, %v1059
        %v1061 = vpop.f32.mrb[0].mxu0
        %1062 = vdwg.mxu0
        %s1063 = scalar_lea.vmem %s607, 8
        %v1064 = vld [vmem:[%s1063] sm:$0xff]
        %v1066 = vsel %vm735, %v1060, 0
        %1068 = vmatprep.subr.mxu0 0.0
        %1069 = vmatpush1.msra.mxu0 %v1064
        %1070 = vmatprep.subr.mxu0 0.0
        %1071 = vmatpush1.msra.mxu0 0.0
        %1072 = vmatprep.subr.mxu0 0.0
        %1073 = vmatpush1.msra.mxu0 0.0
        %1074 = vmatprep.subr.mxu0 0.0
        %1075 = vmatpush1.msra.mxu0 0.0
        %1076 = vmatprep.subr.mxu0 0.0
        %1077 = vmatpush1.msra.mxu0 0.0
        %1078 = vmatprep.subr.mxu0 0.0
        %1079 = vmatpush1.msra.mxu0 0.0
        %1080 = vmatprep.subr.mxu0 0.0
        %1081 = vmatpush1.msra.mxu0 0.0
        %1082 = vmatprep.subr.mxu0 0.0
        %1083 = vmatpush1.msra.mxu0 0.0
        %1084 = vmatprep.subr.mxu0 0.0
        %1085 = vmatpush1.msra.mxu0 0.0
        %1086 = vmatprep.subr.mxu0 0.0
        %1087 = vmatpush1.msra.mxu0 0.0
        %1088 = vmatprep.subr.mxu0 0.0
        %1089 = vmatpush1.msra.mxu0 0.0
        %1090 = vmatprep.subr.mxu0 0.0
        %1091 = vmatpush1.msra.mxu0 0.0
        %1092 = vmatprep.subr.mxu0 0.0
        %1093 = vmatpush1.msra.mxu0 0.0
        %1094 = vmatprep.subr.mxu0 0.0
        %1095 = vmatpush1.msra.mxu0 0.0
        %1096 = vmatprep.subr.mxu0 0.0
        %1097 = vmatpush1.msra.mxu0 0.0
        %1098 = vmatprep.subr.mxu0 0.0
        %1099 = vmatpush1.msra.mxu0 0.0
        %1100 = vmatprep.subr.mxu0 0.0
        %1101 = vmatpush1.msra.mxu0 0.0
        %1102 = vmatprep.subr.mxu0 0.0
        %1103 = vmatpush1.msra.mxu0 0.0
        %1104 = vmatprep.subr.mxu0 0.0
        %1105 = vmatpush1.msra.mxu0 0.0
        %1106 = vmatprep.subr.mxu0 0.0
        %1107 = vmatpush1.msra.mxu0 0.0
        %1108 = vmatprep.subr.mxu0 0.0
        %1109 = vmatpush1.msra.mxu0 0.0
        %1110 = vmatprep.subr.mxu0 0.0
        %1111 = vmatpush1.msra.mxu0 0.0
        %1112 = vmatprep.subr.mxu0 0.0
        %1113 = vmatpush1.msra.mxu0 0.0
        %1114 = vmatprep.subr.mxu0 0.0
        %1115 = vmatpush1.msra.mxu0 0.0
        %1116 = vmatprep.subr.mxu0 0.0
        %1117 = vmatpush1.msra.mxu0 0.0
        %1118 = vmatprep.subr.mxu0 0.0
        %1119 = vmatpush1.msra.mxu0 0.0
        %1120 = vmatprep.subr.mxu0 0.0
        %1121 = vmatpush1.msra.mxu0 0.0
        %1122 = vmatprep.subr.mxu0 0.0
        %1123 = vmatpush1.msra.mxu0 0.0
        %1124 = vmatprep.subr.mxu0 0.0
        %1125 = vmatpush1.msra.mxu0 0.0
        %1126 = vmatprep.subr.mxu0 0.0
        %1127 = vmatpush1.msra.mxu0 0.0
        %1128 = vmatprep.subr.mxu0 0.0
        %1129 = vmatpush1.msra.mxu0 0.0
        %1130 = vmatprep.subr.mxu0 0.0
        %1131 = vmatpush1.msra.mxu0 0.0
        %1132 = vmatprep.mubr.f32.mxu0 0.0
        %1133 = vmatmul.mubr.f32.gmra.mrb[0].mxu0 %v1066
        %v1134 = vpop.f32.mrb[0].mxu0
        %v1135 = vadd.f32 0.0, %v1134
        %v1136 = vpop.f32.mrb[0].mxu0
        %1137 = vdwg.mxu0
        %v1139 = vsel %vm735, %v894, 0
        %1141 = vmatprep.subr.mxu0 0.0
        %1142 = vmatpush1.msra.mxu0 %v897
        %1143 = vmatprep.subr.mxu0 0.0
        %1144 = vmatpush1.msra.mxu0 0.0
        %1145 = vmatprep.subr.mxu0 0.0
        %1146 = vmatpush1.msra.mxu0 0.0
        %1147 = vmatprep.subr.mxu0 0.0
        %1148 = vmatpush1.msra.mxu0 0.0
        %1149 = vmatprep.subr.mxu0 0.0
        %1150 = vmatpush1.msra.mxu0 0.0
        %1151 = vmatprep.subr.mxu0 0.0
        %1152 = vmatpush1.msra.mxu0 0.0
        %1153 = vmatprep.subr.mxu0 0.0
        %1154 = vmatpush1.msra.mxu0 0.0
        %1155 = vmatprep.subr.mxu0 0.0
        %1156 = vmatpush1.msra.mxu0 0.0
        %1157 = vmatprep.subr.mxu0 0.0
        %1158 = vmatpush1.msra.mxu0 0.0
        %1159 = vmatprep.subr.mxu0 0.0
        %1160 = vmatpush1.msra.mxu0 0.0
        %1161 = vmatprep.subr.mxu0 0.0
        %1162 = vmatpush1.msra.mxu0 0.0
        %1163 = vmatprep.subr.mxu0 0.0
        %1164 = vmatpush1.msra.mxu0 0.0
        %1165 = vmatprep.subr.mxu0 0.0
        %1166 = vmatpush1.msra.mxu0 0.0
        %1167 = vmatprep.subr.mxu0 0.0
        %1168 = vmatpush1.msra.mxu0 0.0
        %1169 = vmatprep.subr.mxu0 0.0
        %1170 = vmatpush1.msra.mxu0 0.0
        %1171 = vmatprep.subr.mxu0 0.0
        %1172 = vmatpush1.msra.mxu0 0.0
        %1173 = vmatprep.subr.mxu0 0.0
        %1174 = vmatpush1.msra.mxu0 0.0
        %1175 = vmatprep.subr.mxu0 0.0
        %1176 = vmatpush1.msra.mxu0 0.0
        %1177 = vmatprep.subr.mxu0 0.0
        %1178 = vmatpush1.msra.mxu0 0.0
        %1179 = vmatprep.subr.mxu0 0.0
        %1180 = vmatpush1.msra.mxu0 0.0
        %1181 = vmatprep.subr.mxu0 0.0
        %1182 = vmatpush1.msra.mxu0 0.0
        %1183 = vmatprep.subr.mxu0 0.0
        %1184 = vmatpush1.msra.mxu0 0.0
        %1185 = vmatprep.subr.mxu0 0.0
        %1186 = vmatpush1.msra.mxu0 0.0
        %1187 = vmatprep.subr.mxu0 0.0
        %1188 = vmatpush1.msra.mxu0 0.0
        %1189 = vmatprep.subr.mxu0 0.0
        %1190 = vmatpush1.msra.mxu0 0.0
        %1191 = vmatprep.subr.mxu0 0.0
        %1192 = vmatpush1.msra.mxu0 0.0
        %1193 = vmatprep.subr.mxu0 0.0
        %1194 = vmatpush1.msra.mxu0 0.0
        %1195 = vmatprep.subr.mxu0 0.0
        %1196 = vmatpush1.msra.mxu0 0.0
        %1197 = vmatprep.subr.mxu0 0.0
        %1198 = vmatpush1.msra.mxu0 0.0
        %1199 = vmatprep.subr.mxu0 0.0
        %1200 = vmatpush1.msra.mxu0 0.0
        %1201 = vmatprep.subr.mxu0 0.0
        %1202 = vmatpush1.msra.mxu0 0.0
        %1203 = vmatprep.subr.mxu0 0.0
        %1204 = vmatpush1.msra.mxu0 0.0
        %1205 = vmatprep.mubr.f32.mxu0 0.0
        %1206 = vmatmul.mubr.f32.gmra.mrb[0].mxu0 %v1139
        %v1207 = vpop.f32.mrb[0].mxu0
        %v1208 = vadd.f32 %v1135, %v1207
        %v1209 = vpop.f32.mrb[0].mxu0
        %1210 = vdwg.mxu0
        %1211 = vrot.lane.b32.xlu0 %v729, 112
        %v1212 = vpop.permute.xlu0 %1211
        %1213 = vrot.lane.b32.xlu0 %v729, 80
        %v1214 = vpop.permute.xlu0 %1213
        %v1215 = vsel %vm735, %v1212, 0
        %v1217 = vsel %vm735, %v1214, 0
        %1219 = vmatprep.subr.mxu0 0.0
        %1220 = vmatpush1.xpose.msra.mxu0 %v1217
        %1221 = vmatprep.subr.mxu0 0.0
        %1222 = vmatpush1.xpose.msra.mxu0 0.0
        %1223 = vmatprep.subr.mxu0 0.0
        %1224 = vmatpush1.xpose.msra.mxu0 0.0
        %1225 = vmatprep.subr.mxu0 0.0
        %1226 = vmatpush1.xpose.msra.mxu0 0.0
        %1227 = vmatprep.subr.mxu0 0.0
        %1228 = vmatpush1.xpose.msra.mxu0 0.0
        %1229 = vmatprep.subr.mxu0 0.0
        %1230 = vmatpush1.xpose.msra.mxu0 0.0
        %1231 = vmatprep.subr.mxu0 0.0
        %1232 = vmatpush1.xpose.msra.mxu0 0.0
        %1233 = vmatprep.subr.mxu0 0.0
        %1234 = vmatpush1.xpose.msra.mxu0 0.0
        %1235 = vmatprep.subr.mxu0 0.0
        %1236 = vmatpush1.xpose.msra.mxu0 0.0
        %1237 = vmatprep.subr.mxu0 0.0
        %1238 = vmatpush1.xpose.msra.mxu0 0.0
        %1239 = vmatprep.subr.mxu0 0.0
        %1240 = vmatpush1.xpose.msra.mxu0 0.0
        %1241 = vmatprep.subr.mxu0 0.0
        %1242 = vmatpush1.xpose.msra.mxu0 0.0
        %1243 = vmatprep.subr.mxu0 0.0
        %1244 = vmatpush1.xpose.msra.mxu0 0.0
        %1245 = vmatprep.subr.mxu0 0.0
        %1246 = vmatpush1.xpose.msra.mxu0 0.0
        %1247 = vmatprep.subr.mxu0 0.0
        %1248 = vmatpush1.xpose.msra.mxu0 0.0
        %1249 = vmatprep.subr.mxu0 0.0
        %1250 = vmatpush1.xpose.msra.mxu0 0.0
        %1251 = vmatprep.subr.mxu0 0.0
        %1252 = vmatpush1.xpose.msra.mxu0 0.0
        %1253 = vmatprep.subr.mxu0 0.0
        %1254 = vmatpush1.xpose.msra.mxu0 0.0
        %1255 = vmatprep.subr.mxu0 0.0
        %1256 = vmatpush1.xpose.msra.mxu0 0.0
        %1257 = vmatprep.subr.mxu0 0.0
        %1258 = vmatpush1.xpose.msra.mxu0 0.0
        %1259 = vmatprep.subr.mxu0 0.0
        %1260 = vmatpush1.xpose.msra.mxu0 0.0
        %1261 = vmatprep.subr.mxu0 0.0
        %1262 = vmatpush1.xpose.msra.mxu0 0.0
        %1263 = vmatprep.subr.mxu0 0.0
        %1264 = vmatpush1.xpose.msra.mxu0 0.0
        %1265 = vmatprep.subr.mxu0 0.0
        %1266 = vmatpush1.xpose.msra.mxu0 0.0
        %1267 = vmatprep.subr.mxu0 0.0
        %1268 = vmatpush1.xpose.msra.mxu0 0.0
        %1269 = vmatprep.subr.mxu0 0.0
        %1270 = vmatpush1.xpose.msra.mxu0 0.0
        %1271 = vmatprep.subr.mxu0 0.0
        %1272 = vmatpush1.xpose.msra.mxu0 0.0
        %1273 = vmatprep.subr.mxu0 0.0
        %1274 = vmatpush1.xpose.msra.mxu0 0.0
        %1275 = vmatprep.subr.mxu0 0.0
        %1276 = vmatpush1.xpose.msra.mxu0 0.0
        %1277 = vmatprep.subr.mxu0 0.0
        %1278 = vmatpush1.xpose.msra.mxu0 0.0
        %1279 = vmatprep.subr.mxu0 0.0
        %1280 = vmatpush1.xpose.msra.mxu0 0.0
        %1281 = vmatprep.subr.mxu0 0.0
        %1282 = vmatpush1.xpose.msra.mxu0 0.0
        %1283 = vmatprep.mubr.f32.mxu0 0.0
        %1284 = vmatmul.mubr.f32.gmra.mrb[0].mxu0 %v1215
        %v1285 = vpop.f32.mrb[0].mxu0
        %v1286 = vadd.f32 0.0, %v1285
        %v1287 = vpop.f32.mrb[0].mxu0
        %1288 = vdwg.mxu0
        %v1289 = vsel %vm735, %v1286, -inf
        %1290 = vmax.xlane.f32.xlu0 %v1289
        %v1291 = vpop.xlane.xlu0 %1290
        %v1292 = vsub.f32 %v1286, %v1291
        %v1293 = vmul.f32 %v1292, 1.442695
        %v1294 = vpow.pop %v1293
        %v1295 = vsel %vm735, %v1294, 0.0
        %1296 = vadd.xlane.f32.xlu0 %v1295
        %v1297 = vpop.xlane.xlu0 %1296
        %v1298 = vrcp.pop %v1297
        %v1299 = vmul.f32 %v1294, %v1298
        %1300 = vrot.lane.b32.xlu0 %v729, 48
        %v1301 = vpop.permute.xlu0 %1300
        %v1304 = vsel %vm735, %v1299, 0
        %1306 = vmatprep.subr.mxu0 0.0
        %1307 = vmatpush1.msra.mxu0 %v1301
        %1308 = vmatprep.subr.mxu0 0.0
        %1309 = vmatpush1.msra.mxu0 0.0
        %1310 = vmatprep.subr.mxu0 0.0
        %1311 = vmatpush1.msra.mxu0 0.0
        %1312 = vmatprep.subr.mxu0 0.0
        %1313 = vmatpush1.msra.mxu0 0.0
        %1314 = vmatprep.subr.mxu0 0.0
        %1315 = vmatpush1.msra.mxu0 0.0
        %1316 = vmatprep.subr.mxu0 0.0
        %1317 = vmatpush1.msra.mxu0 0.0
        %1318 = vmatprep.subr.mxu0 0.0
        %1319 = vmatpush1.msra.mxu0 0.0
        %1320 = vmatprep.subr.mxu0 0.0
        %1321 = vmatpush1.msra.mxu0 0.0
        %1322 = vmatprep.subr.mxu0 0.0
        %1323 = vmatpush1.msra.mxu0 0.0
        %1324 = vmatprep.subr.mxu0 0.0
        %1325 = vmatpush1.msra.mxu0 0.0
        %1326 = vmatprep.subr.mxu0 0.0
        %1327 = vmatpush1.msra.mxu0 0.0
        %1328 = vmatprep.subr.mxu0 0.0
        %1329 = vmatpush1.msra.mxu0 0.0
        %1330 = vmatprep.subr.mxu0 0.0
        %1331 = vmatpush1.msra.mxu0 0.0
        %1332 = vmatprep.subr.mxu0 0.0
        %1333 = vmatpush1.msra.mxu0 0.0
        %1334 = vmatprep.subr.mxu0 0.0
        %1335 = vmatpush1.msra.mxu0 0.0
        %1336 = vmatprep.subr.mxu0 0.0
        %1337 = vmatpush1.msra.mxu0 0.0
        %1338 = vmatprep.subr.mxu0 0.0
        %1339 = vmatpush1.msra.mxu0 0.0
        %1340 = vmatprep.subr.mxu0 0.0
        %1341 = vmatpush1.msra.mxu0 0.0
        %1342 = vmatprep.subr.mxu0 0.0
        %1343 = vmatpush1.msra.mxu0 0.0
        %1344 = vmatprep.subr.mxu0 0.0
        %1345 = vmatpush1.msra.mxu0 0.0
        %1346 = vmatprep.subr.mxu0 0.0
        %1347 = vmatpush1.msra.mxu0 0.0
        %1348 = vmatprep.subr.mxu0 0.0
        %1349 = vmatpush1.msra.mxu0 0.0
        %1350 = vmatprep.subr.mxu0 0.0
        %1351 = vmatpush1.msra.mxu0 0.0
        %1352 = vmatprep.subr.mxu0 0.0
        %1353 = vmatpush1.msra.mxu0 0.0
        %1354 = vmatprep.subr.mxu0 0.0
        %1355 = vmatpush1.msra.mxu0 0.0
        %1356 = vmatprep.subr.mxu0 0.0
        %1357 = vmatpush1.msra.mxu0 0.0
        %1358 = vmatprep.subr.mxu0 0.0
        %1359 = vmatpush1.msra.mxu0 0.0
        %1360 = vmatprep.subr.mxu0 0.0
        %1361 = vmatpush1.msra.mxu0 0.0
        %1362 = vmatprep.subr.mxu0 0.0
        %1363 = vmatpush1.msra.mxu0 0.0
        %1364 = vmatprep.subr.mxu0 0.0
        %1365 = vmatpush1.msra.mxu0 0.0
        %1366 = vmatprep.subr.mxu0 0.0
        %1367 = vmatpush1.msra.mxu0 0.0
        %1368 = vmatprep.subr.mxu0 0.0
        %1369 = vmatpush1.msra.mxu0 0.0
        %1370 = vmatprep.mubr.f32.mxu0 0.0
        %1371 = vmatmul.mubr.f32.gmra.mrb[0].mxu0 %v1304
        %v1372 = vpop.f32.mrb[0].mxu0
        %v1373 = vadd.f32 0.0, %v1372
        %v1374 = vpop.f32.mrb[0].mxu0
        %1375 = vdwg.mxu0
        %s1376 = scalar_lea.vmem %s607, 16
        %v1377 = vld [vmem:[%s1376] sm:$0xff]
        %v1379 = vsel %vm735, %v1373, 0
        %1381 = vmatprep.subr.mxu0 0.0
        %1382 = vmatpush1.msra.mxu0 %v1377
        %1383 = vmatprep.subr.mxu0 0.0
        %1384 = vmatpush1.msra.mxu0 0.0
        %1385 = vmatprep.subr.mxu0 0.0
        %1386 = vmatpush1.msra.mxu0 0.0
        %1387 = vmatprep.subr.mxu0 0.0
        %1388 = vmatpush1.msra.mxu0 0.0
        %1389 = vmatprep.subr.mxu0 0.0
        %1390 = vmatpush1.msra.mxu0 0.0
        %1391 = vmatprep.subr.mxu0 0.0
        %1392 = vmatpush1.msra.mxu0 0.0
        %1393 = vmatprep.subr.mxu0 0.0
        %1394 = vmatpush1.msra.mxu0 0.0
        %1395 = vmatprep.subr.mxu0 0.0
        %1396 = vmatpush1.msra.mxu0 0.0
        %1397 = vmatprep.subr.mxu0 0.0
        %1398 = vmatpush1.msra.mxu0 0.0
        %1399 = vmatprep.subr.mxu0 0.0
        %1400 = vmatpush1.msra.mxu0 0.0
        %1401 = vmatprep.subr.mxu0 0.0
        %1402 = vmatpush1.msra.mxu0 0.0
        %1403 = vmatprep.subr.mxu0 0.0
        %1404 = vmatpush1.msra.mxu0 0.0
        %1405 = vmatprep.subr.mxu0 0.0
        %1406 = vmatpush1.msra.mxu0 0.0
        %1407 = vmatprep.subr.mxu0 0.0
        %1408 = vmatpush1.msra.mxu0 0.0
        %1409 = vmatprep.subr.mxu0 0.0
        %1410 = vmatpush1.msra.mxu0 0.0
        %1411 = vmatprep.subr.mxu0 0.0
        %1412 = vmatpush1.msra.mxu0 0.0
        %1413 = vmatprep.subr.mxu0 0.0
        %1414 = vmatpush1.msra.mxu0 0.0
        %1415 = vmatprep.subr.mxu0 0.0
        %1416 = vmatpush1.msra.mxu0 0.0
        %1417 = vmatprep.subr.mxu0 0.0
        %1418 = vmatpush1.msra.mxu0 0.0
        %1419 = vmatprep.subr.mxu0 0.0
        %1420 = vmatpush1.msra.mxu0 0.0
        %1421 = vmatprep.subr.mxu0 0.0
        %1422 = vmatpush1.msra.mxu0 0.0
        %1423 = vmatprep.subr.mxu0 0.0
        %1424 = vmatpush1.msra.mxu0 0.0
        %1425 = vmatprep.subr.mxu0 0.0
        %1426 = vmatpush1.msra.mxu0 0.0
        %1427 = vmatprep.subr.mxu0 0.0
        %1428 = vmatpush1.msra.mxu0 0.0
        %1429 = vmatprep.subr.mxu0 0.0
        %1430 = vmatpush1.msra.mxu0 0.0
        %1431 = vmatprep.subr.mxu0 0.0
        %1432 = vmatpush1.msra.mxu0 0.0
        %1433 = vmatprep.subr.mxu0 0.0
        %1434 = vmatpush1.msra.mxu0 0.0
        %1435 = vmatprep.subr.mxu0 0.0
        %1436 = vmatpush1.msra.mxu0 0.0
        %1437 = vmatprep.subr.mxu0 0.0
        %1438 = vmatpush1.msra.mxu0 0.0
        %1439 = vmatprep.subr.mxu0 0.0
        %1440 = vmatpush1.msra.mxu0 0.0
        %1441 = vmatprep.subr.mxu0 0.0
        %1442 = vmatpush1.msra.mxu0 0.0
        %1443 = vmatprep.subr.mxu0 0.0
        %1444 = vmatpush1.msra.mxu0 0.0
        %1445 = vmatprep.mubr.f32.mxu0 0.0
        %1446 = vmatmul.mubr.f32.gmra.mrb[0].mxu0 %v1379
        %v1447 = vpop.f32.mrb[0].mxu0
        %v1448 = vadd.f32 0.0, %v1447
        %v1449 = vpop.f32.mrb[0].mxu0
        %1450 = vdwg.mxu0
        %v1451 = vadd.f32 %v1208, %v1448
        %1452 = vrot.lane.b32.xlu0 %v729, 104
        %v1453 = vpop.permute.xlu0 %1452
        %1454 = vrot.lane.b32.xlu0 %v729, 72
        %v1455 = vpop.permute.xlu0 %1454
        %v1456 = vsel %vm735, %v1453, 0
        %v1458 = vsel %vm735, %v1455, 0
        %1460 = vmatprep.subr.mxu0 0.0
        %1461 = vmatpush1.xpose.msra.mxu0 %v1458
        %1462 = vmatprep.subr.mxu0 0.0
        %1463 = vmatpush1.xpose.msra.mxu0 0.0
        %1464 = vmatprep.subr.mxu0 0.0
        %1465 = vmatpush1.xpose.msra.mxu0 0.0
        %1466 = vmatprep.subr.mxu0 0.0
        %1467 = vmatpush1.xpose.msra.mxu0 0.0
        %1468 = vmatprep.subr.mxu0 0.0
        %1469 = vmatpush1.xpose.msra.mxu0 0.0
        %1470 = vmatprep.subr.mxu0 0.0
        %1471 = vmatpush1.xpose.msra.mxu0 0.0
        %1472 = vmatprep.subr.mxu0 0.0
        %1473 = vmatpush1.xpose.msra.mxu0 0.0
        %1474 = vmatprep.subr.mxu0 0.0
        %1475 = vmatpush1.xpose.msra.mxu0 0.0
        %1476 = vmatprep.subr.mxu0 0.0
        %1477 = vmatpush1.xpose.msra.mxu0 0.0
        %1478 = vmatprep.subr.mxu0 0.0
        %1479 = vmatpush1.xpose.msra.mxu0 0.0
        %1480 = vmatprep.subr.mxu0 0.0
        %1481 = vmatpush1.xpose.msra.mxu0 0.0
        %1482 = vmatprep.subr.mxu0 0.0
        %1483 = vmatpush1.xpose.msra.mxu0 0.0
        %1484 = vmatprep.subr.mxu0 0.0
        %1485 = vmatpush1.xpose.msra.mxu0 0.0
        %1486 = vmatprep.subr.mxu0 0.0
        %1487 = vmatpush1.xpose.msra.mxu0 0.0
        %1488 = vmatprep.subr.mxu0 0.0
        %1489 = vmatpush1.xpose.msra.mxu0 0.0
        %1490 = vmatprep.subr.mxu0 0.0
        %1491 = vmatpush1.xpose.msra.mxu0 0.0
        %1492 = vmatprep.subr.mxu0 0.0
        %1493 = vmatpush1.xpose.msra.mxu0 0.0
        %1494 = vmatprep.subr.mxu0 0.0
        %1495 = vmatpush1.xpose.msra.mxu0 0.0
        %1496 = vmatprep.subr.mxu0 0.0
        %1497 = vmatpush1.xpose.msra.mxu0 0.0
        %1498 = vmatprep.subr.mxu0 0.0
        %1499 = vmatpush1.xpose.msra.mxu0 0.0
        %1500 = vmatprep.subr.mxu0 0.0
        %1501 = vmatpush1.xpose.msra.mxu0 0.0
        %1502 = vmatprep.subr.mxu0 0.0
        %1503 = vmatpush1.xpose.msra.mxu0 0.0
        %1504 = vmatprep.subr.mxu0 0.0
        %1505 = vmatpush1.xpose.msra.mxu0 0.0
        %1506 = vmatprep.subr.mxu0 0.0
        %1507 = vmatpush1.xpose.msra.mxu0 0.0
        %1508 = vmatprep.subr.mxu0 0.0
        %1509 = vmatpush1.xpose.msra.mxu0 0.0
        %1510 = vmatprep.subr.mxu0 0.0
        %1511 = vmatpush1.xpose.msra.mxu0 0.0
        %1512 = vmatprep.subr.mxu0 0.0
        %1513 = vmatpush1.xpose.msra.mxu0 0.0
        %1514 = vmatprep.subr.mxu0 0.0
        %1515 = vmatpush1.xpose.msra.mxu0 0.0
        %1516 = vmatprep.subr.mxu0 0.0
        %1517 = vmatpush1.xpose.msra.mxu0 0.0
        %1518 = vmatprep.subr.mxu0 0.0
        %1519 = vmatpush1.xpose.msra.mxu0 0.0
        %1520 = vmatprep.subr.mxu0 0.0
        %1521 = vmatpush1.xpose.msra.mxu0 0.0
        %1522 = vmatprep.subr.mxu0 0.0
        %1523 = vmatpush1.xpose.msra.mxu0 0.0
        %1524 = vmatprep.mubr.f32.mxu0 0.0
        %1525 = vmatmul.mubr.f32.gmra.mrb[0].mxu0 %v1456
        %v1526 = vpop.f32.mrb[0].mxu0
        %v1527 = vadd.f32 0.0, %v1526
        %v1528 = vpop.f32.mrb[0].mxu0
        %1529 = vdwg.mxu0
        %v1530 = vsel %vm735, %v1527, -inf
        %1531 = vmax.xlane.f32.xlu0 %v1530
        %v1532 = vpop.xlane.xlu0 %1531
        %v1533 = vsub.f32 %v1527, %v1532
        %v1534 = vmul.f32 %v1533, 1.442695
        %v1535 = vpow.pop %v1534
        %v1536 = vsel %vm735, %v1535, 0.0
        %1537 = vadd.xlane.f32.xlu0 %v1536
        %v1538 = vpop.xlane.xlu0 %1537
        %v1539 = vrcp.pop %v1538
        %v1540 = vmul.f32 %v1535, %v1539
        %1541 = vrot.lane.b32.xlu0 %v729, 40
        %v1542 = vpop.permute.xlu0 %1541
        %v1545 = vsel %vm735, %v1540, 0
        %1547 = vmatprep.subr.mxu0 0.0
        %1548 = vmatpush1.msra.mxu0 %v1542
        %1549 = vmatprep.subr.mxu0 0.0
        %1550 = vmatpush1.msra.mxu0 0.0
        %1551 = vmatprep.subr.mxu0 0.0
        %1552 = vmatpush1.msra.mxu0 0.0
        %1553 = vmatprep.subr.mxu0 0.0
        %1554 = vmatpush1.msra.mxu0 0.0
        %1555 = vmatprep.subr.mxu0 0.0
        %1556 = vmatpush1.msra.mxu0 0.0
        %1557 = vmatprep.subr.mxu0 0.0
        %1558 = vmatpush1.msra.mxu0 0.0
        %1559 = vmatprep.subr.mxu0 0.0
        %1560 = vmatpush1.msra.mxu0 0.0
        %1561 = vmatprep.subr.mxu0 0.0
        %1562 = vmatpush1.msra.mxu0 0.0
        %1563 = vmatprep.subr.mxu0 0.0
        %1564 = vmatpush1.msra.mxu0 0.0
        %1565 = vmatprep.subr.mxu0 0.0
        %1566 = vmatpush1.msra.mxu0 0.0
        %1567 = vmatprep.subr.mxu0 0.0
        %1568 = vmatpush1.msra.mxu0 0.0
        %1569 = vmatprep.subr.mxu0 0.0
        %1570 = vmatpush1.msra.mxu0 0.0
        %1571 = vmatprep.subr.mxu0 0.0
        %1572 = vmatpush1.msra.mxu0 0.0
        %1573 = vmatprep.subr.mxu0 0.0
        %1574 = vmatpush1.msra.mxu0 0.0
        %1575 = vmatprep.subr.mxu0 0.0
        %1576 = vmatpush1.msra.mxu0 0.0
        %1577 = vmatprep.subr.mxu0 0.0
        %1578 = vmatpush1.msra.mxu0 0.0
        %1579 = vmatprep.subr.mxu0 0.0
        %1580 = vmatpush1.msra.mxu0 0.0
        %1581 = vmatprep.subr.mxu0 0.0
        %1582 = vmatpush1.msra.mxu0 0.0
        %1583 = vmatprep.subr.mxu0 0.0
        %1584 = vmatpush1.msra.mxu0 0.0
        %1585 = vmatprep.subr.mxu0 0.0
        %1586 = vmatpush1.msra.mxu0 0.0
        %1587 = vmatprep.subr.mxu0 0.0
        %1588 = vmatpush1.msra.mxu0 0.0
        %1589 = vmatprep.subr.mxu0 0.0
        %1590 = vmatpush1.msra.mxu0 0.0
        %1591 = vmatprep.subr.mxu0 0.0
        %1592 = vmatpush1.msra.mxu0 0.0
        %1593 = vmatprep.subr.mxu0 0.0
        %1594 = vmatpush1.msra.mxu0 0.0
        %1595 = vmatprep.subr.mxu0 0.0
        %1596 = vmatpush1.msra.mxu0 0.0
        %1597 = vmatprep.subr.mxu0 0.0
        %1598 = vmatpush1.msra.mxu0 0.0
        %1599 = vmatprep.subr.mxu0 0.0
        %1600 = vmatpush1.msra.mxu0 0.0
        %1601 = vmatprep.subr.mxu0 0.0
        %1602 = vmatpush1.msra.mxu0 0.0
        %1603 = vmatprep.subr.mxu0 0.0
        %1604 = vmatpush1.msra.mxu0 0.0
        %1605 = vmatprep.subr.mxu0 0.0
        %1606 = vmatpush1.msra.mxu0 0.0
        %1607 = vmatprep.subr.mxu0 0.0
        %1608 = vmatpush1.msra.mxu0 0.0
        %1609 = vmatprep.subr.mxu0 0.0
        %1610 = vmatpush1.msra.mxu0 0.0
        %1611 = vmatprep.mubr.f32.mxu0 0.0
        %1612 = vmatmul.mubr.f32.gmra.mrb[0].mxu0 %v1545
        %v1613 = vpop.f32.mrb[0].mxu0
        %v1614 = vadd.f32 0.0, %v1613
        %v1615 = vpop.f32.mrb[0].mxu0
        %1616 = vdwg.mxu0
        %s1617 = scalar_lea.vmem %s607, 24
        %v1618 = vld [vmem:[%s1617] sm:$0xff]
        %v1620 = vsel %vm735, %v1614, 0
        %1622 = vmatprep.subr.mxu0 0.0
        %1623 = vmatpush1.msra.mxu0 %v1618
        %1624 = vmatprep.subr.mxu0 0.0
        %1625 = vmatpush1.msra.mxu0 0.0
        %1626 = vmatprep.subr.mxu0 0.0
        %1627 = vmatpush1.msra.mxu0 0.0
        %1628 = vmatprep.subr.mxu0 0.0
        %1629 = vmatpush1.msra.mxu0 0.0
        %1630 = vmatprep.subr.mxu0 0.0
        %1631 = vmatpush1.msra.mxu0 0.0
        %1632 = vmatprep.subr.mxu0 0.0
        %1633 = vmatpush1.msra.mxu0 0.0
        %1634 = vmatprep.subr.mxu0 0.0
        %1635 = vmatpush1.msra.mxu0 0.0
        %1636 = vmatprep.subr.mxu0 0.0
        %1637 = vmatpush1.msra.mxu0 0.0
        %1638 = vmatprep.subr.mxu0 0.0
        %1639 = vmatpush1.msra.mxu0 0.0
        %1640 = vmatprep.subr.mxu0 0.0
        %1641 = vmatpush1.msra.mxu0 0.0
        %1642 = vmatprep.subr.mxu0 0.0
        %1643 = vmatpush1.msra.mxu0 0.0
        %1644 = vmatprep.subr.mxu0 0.0
        %1645 = vmatpush1.msra.mxu0 0.0
        %1646 = vmatprep.subr.mxu0 0.0
        %1647 = vmatpush1.msra.mxu0 0.0
        %1648 = vmatprep.subr.mxu0 0.0
        %1649 = vmatpush1.msra.mxu0 0.0
        %1650 = vmatprep.subr.mxu0 0.0
        %1651 = vmatpush1.msra.mxu0 0.0
        %1652 = vmatprep.subr.mxu0 0.0
        %1653 = vmatpush1.msra.mxu0 0.0
        %1654 = vmatprep.subr.mxu0 0.0
        %1655 = vmatpush1.msra.mxu0 0.0
        %1656 = vmatprep.subr.mxu0 0.0
        %1657 = vmatpush1.msra.mxu0 0.0
        %1658 = vmatprep.subr.mxu0 0.0
        %1659 = vmatpush1.msra.mxu0 0.0
        %1660 = vmatprep.subr.mxu0 0.0
        %1661 = vmatpush1.msra.mxu0 0.0
        %1662 = vmatprep.subr.mxu0 0.0
        %1663 = vmatpush1.msra.mxu0 0.0
        %1664 = vmatprep.subr.mxu0 0.0
        %1665 = vmatpush1.msra.mxu0 0.0
        %1666 = vmatprep.subr.mxu0 0.0
        %1667 = vmatpush1.msra.mxu0 0.0
        %1668 = vmatprep.subr.mxu0 0.0
        %1669 = vmatpush1.msra.mxu0 0.0
        %1670 = vmatprep.subr.mxu0 0.0
        %1671 = vmatpush1.msra.mxu0 0.0
        %1672 = vmatprep.subr.mxu0 0.0
        %1673 = vmatpush1.msra.mxu0 0.0
        %1674 = vmatprep.subr.mxu0 0.0
        %1675 = vmatpush1.msra.mxu0 0.0
        %1676 = vmatprep.subr.mxu0 0.0
        %1677 = vmatpush1.msra.mxu0 0.0
        %1678 = vmatprep.subr.mxu0 0.0
        %1679 = vmatpush1.msra.mxu0 0.0
        %1680 = vmatprep.subr.mxu0 0.0
        %1681 = vmatpush1.msra.mxu0 0.0
        %1682 = vmatprep.subr.mxu0 0.0
        %1683 = vmatpush1.msra.mxu0 0.0
        %1684 = vmatprep.subr.mxu0 0.0
        %1685 = vmatpush1.msra.mxu0 0.0
        %1686 = vmatprep.mubr.f32.mxu0 0.0
        %1687 = vmatmul.mubr.f32.gmra.mrb[0].mxu0 %v1620
        %v1688 = vpop.f32.mrb[0].mxu0
        %v1689 = vadd.f32 0.0, %v1688
        %v1690 = vpop.f32.mrb[0].mxu0
        %1691 = vdwg.mxu0
        %v1692 = vadd.f32 %v1451, %v1689
        %v1693 = vld [vmem:[%s610] sm:$0x1]
        %v1695 = vlaneseq
        %v1696 = vshrl.u32 %v1695, 7
        %v1697 = vsub.s32 0, %v1696
        %v1698 = vrot.slane %v1693, %v1697
        %v1700 = vadd.f32 %v1692, %v1698
        %v1701 = vadd.f32 %v646, %v1700
        %v1702 = vld [vmem:[%s613] sm:$0x1]
        %v1703 = vld [vmem:[%s616] sm:$0x1]
        %v1704 = vsel %vm658, %v1701, 0.0
        %1705 = vadd.xlane.f32.xlu0 %v1704
        %v1706 = vpop.xlane.xlu0 %1705
        %v1707 = vrcp.pop 32.0
        %v1708 = vmul.f32 %v1706, %v1707
        %v1709 = vsub.f32 %v1701, %v1708
        %v1710 = vmul.f32 %v1709, %v1709
        %v1711 = vsel %vm658, %v1710, 0.0
        %1712 = vadd.xlane.f32.xlu0 %v1711
        %v1713 = vpop.xlane.xlu0 %1712
        %v1714 = vmul.f32 %v1713, %v1707
        %v1715 = vadd.f32 %v1714, 1e-06
        %v1716 = vrsqrt.pop %v1715
        %v1717 = vmul.f32 %v1709, %v1716
        %v1719 = vlaneseq
        %v1720 = vshrl.u32 %v1719, 7
        %v1721 = vsub.s32 0, %v1720
        %v1722 = vrot.slane %v1702, %v1721
        %v1724 = vmul.f32 %v1717, %v1722
        %v1726 = vlaneseq
        %v1727 = vshrl.u32 %v1726, 7
        %v1728 = vsub.s32 0, %v1727
        %v1729 = vrot.slane %v1703, %v1728
        %v1731 = vadd.f32 %v1724, %v1729
        %v1732 = vld [vmem:[%s621] sm:$0xff]
        %v1733 = vld [vmem:[%s621 + $0x8] sm:$0xff]
        %v1734 = vld [vmem:[%s621 + $0x10] sm:$0xff]
        %v1735 = vld [vmem:[%s621 + $0x18] sm:$0xff]
        %v1736 = vld [vmem:[%s624] sm:$0x1]
        %v1738 = vlaneseq
        %v1739 = vshrl.u32 %v1738, 7
        %v1740 = vsub.s32 0, %v1739
        %v1741 = vrot.slane %v1736, %v1740
        %v1744 = vsel %vm658, %v1731, 0
        %1746 = vmatprep.subr.mxu0 0.0
        %1747 = vmatpush1.msra.mxu0 %v1732
        %1748 = vmatprep.subr.mxu0 0.0
        %1749 = vmatpush1.msra.mxu0 %v1733
        %1750 = vmatprep.subr.mxu0 0.0
        %1751 = vmatpush1.msra.mxu0 %v1734
        %1752 = vmatprep.subr.mxu0 0.0
        %1753 = vmatpush1.msra.mxu0 %v1735
        %1754 = vmatprep.subr.mxu0 0.0
        %1755 = vmatpush1.msra.mxu0 0.0
        %1756 = vmatprep.subr.mxu0 0.0
        %1757 = vmatpush1.msra.mxu0 0.0
        %1758 = vmatprep.subr.mxu0 0.0
        %1759 = vmatpush1.msra.mxu0 0.0
        %1760 = vmatprep.subr.mxu0 0.0
        %1761 = vmatpush1.msra.mxu0 0.0
        %1762 = vmatprep.subr.mxu0 0.0
        %1763 = vmatpush1.msra.mxu0 0.0
        %1764 = vmatprep.subr.mxu0 0.0
        %1765 = vmatpush1.msra.mxu0 0.0
        %1766 = vmatprep.subr.mxu0 0.0
        %1767 = vmatpush1.msra.mxu0 0.0
        %1768 = vmatprep.subr.mxu0 0.0
        %1769 = vmatpush1.msra.mxu0 0.0
        %1770 = vmatprep.subr.mxu0 0.0
        %1771 = vmatpush1.msra.mxu0 0.0
        %1772 = vmatprep.subr.mxu0 0.0
        %1773 = vmatpush1.msra.mxu0 0.0
        %1774 = vmatprep.subr.mxu0 0.0
        %1775 = vmatpush1.msra.mxu0 0.0
        %1776 = vmatprep.subr.mxu0 0.0
        %1777 = vmatpush1.msra.mxu0 0.0
        %1778 = vmatprep.subr.mxu0 0.0
        %1779 = vmatpush1.msra.mxu0 0.0
        %1780 = vmatprep.subr.mxu0 0.0
        %1781 = vmatpush1.msra.mxu0 0.0
        %1782 = vmatprep.subr.mxu0 0.0
        %1783 = vmatpush1.msra.mxu0 0.0
        %1784 = vmatprep.subr.mxu0 0.0
        %1785 = vmatpush1.msra.mxu0 0.0
        %1786 = vmatprep.subr.mxu0 0.0
        %1787 = vmatpush1.msra.mxu0 0.0
        %1788 = vmatprep.subr.mxu0 0.0
        %1789 = vmatpush1.msra.mxu0 0.0
        %1790 = vmatprep.subr.mxu0 0.0
        %1791 = vmatpush1.msra.mxu0 0.0
        %1792 = vmatprep.subr.mxu0 0.0
        %1793 = vmatpush1.msra.mxu0 0.0
        %1794 = vmatprep.subr.mxu0 0.0
        %1795 = vmatpush1.msra.mxu0 0.0
        %1796 = vmatprep.subr.mxu0 0.0
        %1797 = vmatpush1.msra.mxu0 0.0
        %1798 = vmatprep.subr.mxu0 0.0
        %1799 = vmatpush1.msra.mxu0 0.0
        %1800 = vmatprep.subr.mxu0 0.0
        %1801 = vmatpush1.msra.mxu0 0.0
        %1802 = vmatprep.subr.mxu0 0.0
        %1803 = vmatpush1.msra.mxu0 0.0
        %1804 = vmatprep.subr.mxu0 0.0
        %1805 = vmatpush1.msra.mxu0 0.0
        %1806 = vmatprep.subr.mxu0 0.0
        %1807 = vmatpush1.msra.mxu0 0.0
        %1808 = vmatprep.subr.mxu0 0.0
        %1809 = vmatpush1.msra.mxu0 0.0
        %1810 = vmatprep.mubr.f32.mxu0 0.0
        %1811 = vmatmul.mubr.f32.gmra.mrb[0].mxu0 %v1744
        %v1812 = vpop.f32.mrb[0].mxu0
        %v1813 = vadd.f32 %v1741, %v1812
        %v1814 = vpop.f32.mrb[0].mxu0
        %1815 = vdwg.mxu0
        %v1816 = vmax.f32 %v1813, 0.0
        %v1817 = vld [vmem:[%s629] sm:$0xff]
        %v1818 = vld [vmem:[%s629 + $0x8] sm:$0xff]
        %v1819 = vld [vmem:[%s629 + $0x10] sm:$0xff]
        %v1820 = vld [vmem:[%s629 + $0x18] sm:$0xff]
        %v1821 = vld [vmem:[%s629 + $0x20] sm:$0xff]
        %v1822 = vld [vmem:[%s629 + $0x28] sm:$0xff]
        %v1823 = vld [vmem:[%s629 + $0x30] sm:$0xff]
        %v1824 = vld [vmem:[%s629 + $0x38] sm:$0xff]
        %v1825 = vld [vmem:[%s629 + $0x40] sm:$0xff]
        %v1826 = vld [vmem:[%s629 + $0x48] sm:$0xff]
        %v1827 = vld [vmem:[%s629 + $0x50] sm:$0xff]
        %v1828 = vld [vmem:[%s629 + $0x58] sm:$0xff]
        %v1829 = vld [vmem:[%s629 + $0x60] sm:$0xff]
        %v1830 = vld [vmem:[%s629 + $0x68] sm:$0xff]
        %v1831 = vld [vmem:[%s629 + $0x70] sm:$0xff]
        %v1832 = vld [vmem:[%s629 + $0x78] sm:$0xff]
        %v1833 = vld [vmem:[%s632] sm:$0x1]
        %v1835 = vlaneseq
        %v1836 = vshrl.u32 %v1835, 7
        %v1837 = vsub.s32 0, %v1836
        %v1838 = vrot.slane %v1833, %v1837
        %1840 = vmatprep.subr.mxu0 0.0
        %1841 = vmatpush1.msra.mxu0 %v1817
        %1842 = vmatprep.subr.mxu0 0.0
        %1843 = vmatpush1.msra.mxu0 %v1818
        %1844 = vmatprep.subr.mxu0 0.0
        %1845 = vmatpush1.msra.mxu0 %v1819
        %1846 = vmatprep.subr.mxu0 0.0
        %1847 = vmatpush1.msra.mxu0 %v1820
        %1848 = vmatprep.subr.mxu0 0.0
        %1849 = vmatpush1.msra.mxu0 %v1821
        %1850 = vmatprep.subr.mxu0 0.0
        %1851 = vmatpush1.msra.mxu0 %v1822
        %1852 = vmatprep.subr.mxu0 0.0
        %1853 = vmatpush1.msra.mxu0 %v1823
        %1854 = vmatprep.subr.mxu0 0.0
        %1855 = vmatpush1.msra.mxu0 %v1824
        %1856 = vmatprep.subr.mxu0 0.0
        %1857 = vmatpush1.msra.mxu0 %v1825
        %1858 = vmatprep.subr.mxu0 0.0
        %1859 = vmatpush1.msra.mxu0 %v1826
        %1860 = vmatprep.subr.mxu0 0.0
        %1861 = vmatpush1.msra.mxu0 %v1827
        %1862 = vmatprep.subr.mxu0 0.0
        %1863 = vmatpush1.msra.mxu0 %v1828
        %1864 = vmatprep.subr.mxu0 0.0
        %1865 = vmatpush1.msra.mxu0 %v1829
        %1866 = vmatprep.subr.mxu0 0.0
        %1867 = vmatpush1.msra.mxu0 %v1830
        %1868 = vmatprep.subr.mxu0 0.0
        %1869 = vmatpush1.msra.mxu0 %v1831
        %1870 = vmatprep.subr.mxu0 0.0
        %1871 = vmatpush1.msra.mxu0 %v1832
        %1872 = vmatprep.subr.mxu0 0.0
        %1873 = vmatpush1.msra.mxu0 0.0
        %1874 = vmatprep.subr.mxu0 0.0
        %1875 = vmatpush1.msra.mxu0 0.0
        %1876 = vmatprep.subr.mxu0 0.0
        %1877 = vmatpush1.msra.mxu0 0.0
        %1878 = vmatprep.subr.mxu0 0.0
        %1879 = vmatpush1.msra.mxu0 0.0
        %1880 = vmatprep.subr.mxu0 0.0
        %1881 = vmatpush1.msra.mxu0 0.0
        %1882 = vmatprep.subr.mxu0 0.0
        %1883 = vmatpush1.msra.mxu0 0.0
        %1884 = vmatprep.subr.mxu0 0.0
        %1885 = vmatpush1.msra.mxu0 0.0
        %1886 = vmatprep.subr.mxu0 0.0
        %1887 = vmatpush1.msra.mxu0 0.0
        %1888 = vmatprep.subr.mxu0 0.0
        %1889 = vmatpush1.msra.mxu0 0.0
        %1890 = vmatprep.subr.mxu0 0.0
        %1891 = vmatpush1.msra.mxu0 0.0
        %1892 = vmatprep.subr.mxu0 0.0
        %1893 = vmatpush1.msra.mxu0 0.0
        %1894 = vmatprep.subr.mxu0 0.0
        %1895 = vmatpush1.msra.mxu0 0.0
        %1896 = vmatprep.subr.mxu0 0.0
        %1897 = vmatpush1.msra.mxu0 0.0
        %1898 = vmatprep.subr.mxu0 0.0
        %1899 = vmatpush1.msra.mxu0 0.0
        %1900 = vmatprep.subr.mxu0 0.0
        %1901 = vmatpush1.msra.mxu0 0.0
        %1902 = vmatprep.subr.mxu0 0.0
        %1903 = vmatpush1.msra.mxu0 0.0
        %1904 = vmatprep.mubr.f32.mxu0 0.0
        %1905 = vmatmul.mubr.f32.gmra.mrb[0].mxu0 %v1816
        %v1906 = vpop.f32.mrb[0].mxu0
        %v1907 = vadd.f32 %v1838, %v1906
        %v1908 = vpop.f32.mrb[0].mxu0
        %1909 = vdwg.mxu0
        %v1910 = vadd.f32 %v1731, %v1907
        %v1911 = vld [vmem:[%s635] sm:$0x1]
        %v1912 = vld [vmem:[%s638] sm:$0x1]
        %v1913 = vsel %vm658, %v1910, 0.0
        %1914 = vadd.xlane.f32.xlu0 %v1913
        %v1915 = vpop.xlane.xlu0 %1914
        %v1916 = vmul.f32 %v1915, %v1707
        %v1917 = vsub.f32 %v1910, %v1916
        %v1918 = vmul.f32 %v1917, %v1917
        %v1919 = vsel %vm658, %v1918, 0.0
        %1920 = vadd.xlane.f32.xlu0 %v1919
        %v1921 = vpop.xlane.xlu0 %1920
        %v1922 = vmul.f32 %v1921, %v1707
        %v1923 = vadd.f32 %v1922, 1e-06
        %v1924 = vrsqrt.pop %v1923
        %v1925 = vmul.f32 %v1917, %v1924
        %v1927 = vlaneseq
        %v1928 = vshrl.u32 %v1927, 7
        %v1929 = vsub.s32 0, %v1928
        %v1930 = vrot.slane %v1911, %v1929
        %v1932 = vmul.f32 %v1925, %v1930
        %v1934 = vlaneseq
        %v1935 = vshrl.u32 %v1934, 7
        %v1936 = vsub.s32 0, %v1935
        %v1937 = vrot.slane %v1912, %v1936
        %v1939 = vadd.f32 %v1932, %v1937
        %1940 = vst.msk [vmem:[#allocation2] sm:$0xff] %vm658, %v1939
        %p1941 = scmp.eq.s32.totalorder %s32, 1
        // Predicated region
        $region77: #{tpu_custom_call.1} parent=71 // pred_check
          %p1942 = pneg %p1941
        $region78: #{tpu_custom_call.1} parent=71 // pred_check_branch
          %1944 = sbr.rel (%p1942) target = $region80
        $region79: #{tpu_custom_call.1} parent=71 // pred_region
          %v1945 = vsel %vm658, %v1939, 0.0
          %v1946 = vrot.slane %v1945, 4
          %v1947 = vadd.f32 %v1945, %v1946
          %v1948 = vrot.slane %v1947, 2
          %v1949 = vadd.f32 %v1947, %v1948
          %v1950 = vrot.slane %v1949, 1
          %v1951 = vadd.f32 %v1949, %v1950
          %v1952 = vrcp.pop 8.0
          %v1953 = vmul.f32 %v1951, %v1952
          %vm1954 = vcmask 253952
          %1955 = vst.msk [vmem:[%s590] sm:$0x1] %vm1954, %v1953
        $region80: #{tpu_custom_call.1} parent=71 // pred_fallthru
          _
        %s1956 = sand.u32 %s385, 1
        %s1957 = scalar_lea.sflag [#allocation4], %s1956
        %s1958 = sand.u32 %s385, 1
        %s1959 = scalar_lea.vmem [#allocation3], %s1958
        // Predicated region
        $region81: #{tpu_custom_call.1} parent=71 // pred_check
          %p1960 = pneg %p395
        $region82: #{tpu_custom_call.1} parent=71 // pred_check_branch
          %1962 = sbr.rel (%p1960) target = $region84
        $region83: #{tpu_custom_call.1} parent=71 // pred_region
          %s1964 = ssub.s32 16, 16
          %1965 = vsyncadd %s1957, %s1964
          %s1966 = smul.addr %s31, 16
          %s1967 = scalar_lea.hbm %s13, %s1966
          %s1969 = sshll.u32 %s1959, 4
          %s1970 = int_to_ptr.vmem [resolvable:$true] %s1969
          %1972 = dma.vmem_to_hbm [thread:$0]  %s1970, 16, %s1967, %s1957
        $region84: #{tpu_custom_call.1} parent=71 // pred_fallthru
          _
      $region72: #{tpu_custom_call.1} parent=5 // pred_fallthru
        _
      %p1973 = scmp.le.s32.totalorder 2, %s22
      // Predicated region
      $region85: #{tpu_custom_call.1} parent=5 // pred_check
        %p1974 = pneg %p1973
      $region86: #{tpu_custom_call.1} parent=5 // pred_check_branch
        %1976 = sbr.rel (%p1974) target = $region88
      $region87: #{tpu_custom_call.1} parent=5 // pred_region
        %s1977 = ssub.s32 %s22, 2
        // Predicated region
        $region89: #{tpu_custom_call.1} parent=87 // pred_check
          %p1978 = pneg %p401
        $region90: #{tpu_custom_call.1} parent=87 // pred_check_branch
          %1980 = sbr.rel (%p1978) target = $region92
        $region91: #{tpu_custom_call.1} parent=87 // pred_region
          %s1981 = sand.u32 %s386, 1
          %s1982 = scalar_lea.sflag [#allocation4], %s1981
          %s1983 = sand.u32 %s386, 1
          %s1984 = scalar_lea.vmem [#allocation3], %s1983
          %1985 = dma.done %s1982, 16
        $region92: #{tpu_custom_call.1} parent=87 // pred_fallthru
          _
      $region88: #{tpu_custom_call.1} parent=5 // pred_fallthru
        _
    $region6: #{tpu_custom_call.1} parent=1 // loop_footer
      %s26 = sadd.s32 1, %s22
    $region7: #{tpu_custom_call.1} parent=1 // loop_footer_branch
      %21 = sbr.rel target = $region3
    $region8: #{tpu_custom_call.1} parent=1 // loop_exit
      _
    %1986 = vsyncpa [#allocation4], 1
    %s1987 = scalar_lea.sflag [#allocation4], 1
    %1988 = vsyncpa %s1987, 1

</llo_original>
